<compile_context>
chip_gen: v7x
topology: tpu7x:2x2x1
jax: 0.10.0
libtpu: 0.0.40
codegen_flags: <defaults>
</compile_context>

<pallas_src>
import functools

import jax
import jax.numpy as jnp
from jax.experimental import pallas as pl
from jax.experimental.pallas import tpu as pltpu

OB_SHAPE = 2
HIDDEN = 8
N_ACS = 4

SUPER_ROWS = 8 * 128          # rows per (8, 128) f32 plane tile
MAX_BATCH_TILE = 64 * 1024    # rows per grid step (multiple of SUPER_ROWS)


def qnet_ind_kernel(x_ref, w1_ref, b1_ref, w2_ref, b2_ref, w3_ref, b3_ref, o_ref):
    """x_ref: (OB_SHAPE, sb, 8, 128) VMEM.  Weights/biases: SMEM scalars.
    o_ref: (N_ACS, sb, 8, 128) VMEM."""
    x0 = x_ref[0]          # (sb, 8, 128) batch plane, feature 0
    x1 = x_ref[1]          # (sb, 8, 128) batch plane, feature 1

    # ---- Layer 1: Linear(2 -> 8) + ReLU (scalar-broadcast FMAs, pure VALU) ----
    h1 = []
    for f in range(HIDDEN):
        acc = x0 * w1_ref[f, 0] + x1 * w1_ref[f, 1] + b1_ref[f]
        h1.append(jnp.maximum(acc, 0.0))

    # ---- Layer 2: Linear(8 -> 8) + ReLU, two independent partial sums ----
    h2 = []
    for f in range(HIDDEN):
        even = h1[0] * w2_ref[f, 0]
        odd = h1[1] * w2_ref[f, 1]
        for k in range(2, HIDDEN, 2):
            even = even + h1[k] * w2_ref[f, k]
            odd = odd + h1[k + 1] * w2_ref[f, k + 1]
        h2.append(jnp.maximum(even + odd + b2_ref[f], 0.0))

    # ---- Layer 3: Linear(8 -> 4), no activation (Q-values) ----
    for f in range(N_ACS):
        even = h2[0] * w3_ref[f, 0]
        odd = h2[1] * w3_ref[f, 1]
        for k in range(2, HIDDEN, 2):
            even = even + h2[k] * w3_ref[f, k]
            odd = odd + h2[k + 1] * w3_ref[f, k + 1]
        o_ref[f] = (even + odd + b3_ref[f]).astype(o_ref.dtype)


def _pick_block(batch, block_b):
    """Choose a lane/plane-dense batch tile (multiple of 1024 rows)."""
    if block_b is not None:
        if block_b <= 0 or block_b % SUPER_ROWS != 0:
            raise ValueError(f"block_b must be a positive multiple of {SUPER_ROWS}")
    else:
        bq = pl.cdiv(batch, SUPER_ROWS) * SUPER_ROWS
        # Target >= 2 grid steps once the batch exceeds one super-tile so a
        # v7x megacore can shard the "parallel" grid across both TensorCores.
        half = pl.cdiv(pl.cdiv(bq, 2), SUPER_ROWS) * SUPER_ROWS
        block_b = max(SUPER_ROWS, min(MAX_BATCH_TILE, half))
    bp = pl.cdiv(batch, block_b) * block_b
    return block_b, bp


def _qnet_ind_pallas(x_planes, w1, b1, w2, b2, w3, b3, *, block_b):
    """x_planes: (OB_SHAPE, n_super, 8, 128) f32, n_super*1024 divisible by block_b."""
    n_super = x_planes.shape[1]
    sb = block_b // SUPER_ROWS
    grid = (n_super // sb,)
    rows = n_super * SUPER_ROWS

    smem = pl.BlockSpec(memory_space=pltpu.MemorySpace.SMEM)
    flops = 2 * rows * (OB_SHAPE * HIDDEN + HIDDEN * HIDDEN + HIDDEN * N_ACS)
    bytes_accessed = 4 * rows * (OB_SHAPE + N_ACS) + 4 * (
        OB_SHAPE * HIDDEN + HIDDEN * HIDDEN + HIDDEN * N_ACS + 2 * HIDDEN + N_ACS
    )

    return pl.pallas_call(
        qnet_ind_kernel,
        out_shape=jax.ShapeDtypeStruct((N_ACS, n_super, 8, 128), jnp.float32),
        grid=grid,
        in_specs=[
            pl.BlockSpec((OB_SHAPE, sb, 8, 128), lambda i: (0, i, 0, 0)),  # obs planes (pipelined)
            smem,  # w1 (8, 2)
            smem,  # b1 (8,)
            smem,  # w2 (8, 8)
            smem,  # b2 (8,)
            smem,  # w3 (4, 8)
            smem,  # b3 (4,)
        ],
        out_specs=pl.BlockSpec((N_ACS, sb, 8, 128), lambda i: (0, i, 0, 0)),
        compiler_params=pltpu.CompilerParams(
            dimension_semantics=("parallel",),
            vmem_limit_bytes=32 * 1024 * 1024,
        ),
        cost_estimate=pl.CostEstimate(
            flops=flops, transcendentals=0, bytes_accessed=bytes_accessed
        ),
    )(x_planes, w1, b1, w2, b2, w3, b3)


@functools.partial(jax.jit, static_argnames=("block_b",))
def qnet_ind_forward_feature_major(x_fm, params, *, block_b=None):
    """Preferred entry point: x_fm (OB_SHAPE, B) -> Q (N_ACS, B).

    Only free row-major reshapes on the hot path; pad/slice touch the padded
    tail only.  Consumers can argmax over axis 0.
    """
    assert x_fm.shape[0] == OB_SHAPE
    batch = x_fm.shape[1]
    block_b, bp = _pick_block(batch, block_b)

    x = x_fm.astype(jnp.float32)
    if bp != batch:
        x = jnp.pad(x, ((0, 0), (0, bp - batch)))
    x_planes = x.reshape(OB_SHAPE, bp // SUPER_ROWS, 8, 128)  # free reshape

    f32 = lambda a: a.astype(jnp.float32)
    q_planes = _qnet_ind_pallas(
        x_planes,
        f32(params["w1"]), f32(params["b1"]),
        f32(params["w2"]), f32(params["b2"]),
        f32(params["w3"]), f32(params["b3"]),
        block_b=block_b,
    )
    q_fm = q_planes.reshape(N_ACS, bp)                        # free reshape
    return q_fm[:, :batch] if bp != batch else q_fm


@functools.partial(jax.jit, static_argnames=("block_b",))
def qnet_ind_forward(obs, params, *, block_b=None):
    """PyTorch-contract wrapper: obs (B, OB_SHAPE) -> Q (B, N_ACS).

    The boundary transposes re-stream HBM; large-batch consumers should call
    qnet_ind_forward_feature_major directly.
    """
    q_fm = qnet_ind_forward_feature_major(obs.T, params, block_b=block_b)
    return q_fm.T


def init_params(key):
    """PyTorch nn.Linear default init (uniform +-1/sqrt(fan_in)).

    Weights in PyTorch layout (out_features, in_features); biases (out_features,).
    """
    ks = jax.random.split(key, 6)

    def linear_init(kw, kb, fan_in, fan_out):
        bound = 1.0 / jnp.sqrt(jnp.float32(fan_in))
        w = jax.random.uniform(kw, (fan_out, fan_in), jnp.float32, -bound, bound)
        b = jax.random.uniform(kb, (fan_out,), jnp.float32, -bound, bound)
        return w, b

    w1, b1 = linear_init(ks[0], ks[1], OB_SHAPE, HIDDEN)
    w2, b2 = linear_init(ks[2], ks[3], HIDDEN, HIDDEN)
    w3, b3 = linear_init(ks[4], ks[5], HIDDEN, N_ACS)
    return {"w1": w1, "b1": b1, "w2": w2, "b2": b2, "w3": w3, "b3": b3}


def reference_forward(obs, p):
    h1 = jnp.maximum(obs @ p["w1"].T + p["b1"], 0.0)
    h2 = jnp.maximum(h1 @ p["w2"].T + p["b2"], 0.0)
    return h2 @ p["w3"].T + p["b3"]


if __name__ == "__main__":
    key = jax.random.PRNGKey(0)
    k_param, k_obs = jax.random.split(key)

    params = init_params(k_param)

    # Small-batch check (PyTorch contract).
    obs = jax.random.normal(k_obs, (8, OB_SHAPE), jnp.float32)
    q = jax.block_until_ready(qnet_ind_forward(obs, params))
    q_ref = reference_forward(obs, params)
    assert q.shape == (8, N_ACS)
    assert jnp.allclose(q, q_ref, atol=1e-5, rtol=1e-5)

    # Exercise the padded, multi-step-grid path once (grid = 2, block_b = 1024).
    obs2 = jax.random.normal(jax.random.PRNGKey(1), (1200, OB_SHAPE), jnp.float32)
    q2 = jax.block_until_ready(qnet_ind_forward(obs2, params))
    assert q2.shape == (1200, N_ACS)
    assert jnp.allclose(q2, reference_forward(obs2, params), atol=1e-5, rtol=1e-5)

    print("KERNEL_OK")
</pallas_src>

<mosaic_0001>
module attributes {stable_mosaic.version = 11 : i64} {
  func.func @qnet_ind_kernel(%arg0: i32, %arg1: memref<2x1x8x128xf32, #tpu.memory_space<vmem>>, %arg2: memref<8x2xf32, #tpu.memory_space<smem>>, %arg3: memref<8xf32, #tpu.memory_space<smem>>, %arg4: memref<8x8xf32, #tpu.memory_space<smem>>, %arg5: memref<8xf32, #tpu.memory_space<smem>>, %arg6: memref<4x8xf32, #tpu.memory_space<smem>>, %arg7: memref<4xf32, #tpu.memory_space<smem>>, %arg8: memref<4x1x8x128xf32, #tpu.memory_space<vmem>>) attributes {dimension_semantics = [#tpu.dimension_semantics<parallel>], iteration_bounds = array<i64: 1>, scalar_prefetch = 0 : i64, scratch_operands = 0 : i64, tpu.core_type = #tpu.core_type<tc>, window_params = [{transform_indices = @transform_0, window_bounds = array<i64: 2, 1, 8, 128>}, {transform_indices = @transform_1, window_bounds = array<i64: 8, 2>}, {transform_indices = @transform_2, window_bounds = array<i64: 8>}, {transform_indices = @transform_3, window_bounds = array<i64: 8, 8>}, {transform_indices = @transform_4, window_bounds = array<i64: 8>}, {transform_indices = @transform_5, window_bounds = array<i64: 4, 8>}, {transform_indices = @transform_6, window_bounds = array<i64: 4>}, {transform_indices = @transform_7, window_bounds = array<i64: 4, 1, 8, 128>}]} {
    %c0 = arith.constant 0 : index
    %c0_0 = arith.constant 0 : index
    %c0_1 = arith.constant 0 : index
    %c0_2 = arith.constant 0 : index
    %0 = vector.load %arg1[%c0, %c0_0, %c0_1, %c0_2] : memref<2x1x8x128xf32, #tpu.memory_space<vmem>>, vector<1x1x8x128xf32>
    %1 = vector.shape_cast %0 : vector<1x1x8x128xf32> to vector<1x8x128xf32>
    %c1 = arith.constant 1 : index
    %c0_3 = arith.constant 0 : index
    %c0_4 = arith.constant 0 : index
    %c0_5 = arith.constant 0 : index
    %2 = vector.load %arg1[%c1, %c0_3, %c0_4, %c0_5] : memref<2x1x8x128xf32, #tpu.memory_space<vmem>>, vector<1x1x8x128xf32>
    %3 = vector.shape_cast %2 : vector<1x1x8x128xf32> to vector<1x8x128xf32>
    %c0_6 = arith.constant 0 : index
    %c0_7 = arith.constant 0 : index
    %4 = memref.load %arg2[%c0_6, %c0_7] : memref<8x2xf32, #tpu.memory_space<smem>>
    %5 = vector.broadcast %4 : f32 to vector<1x8x128xf32>
    %6 = arith.mulf %1, %5 : vector<1x8x128xf32>
    %c0_8 = arith.constant 0 : index
    %c1_9 = arith.constant 1 : index
    %7 = memref.load %arg2[%c0_8, %c1_9] : memref<8x2xf32, #tpu.memory_space<smem>>
    %8 = vector.broadcast %7 : f32 to vector<1x8x128xf32>
    %9 = arith.mulf %3, %8 : vector<1x8x128xf32>
    %10 = arith.addf %6, %9 : vector<1x8x128xf32>
    %c0_10 = arith.constant 0 : index
    %11 = memref.load %arg3[%c0_10] : memref<8xf32, #tpu.memory_space<smem>>
    %12 = vector.broadcast %11 : f32 to vector<1x8x128xf32>
    %13 = arith.addf %10, %12 : vector<1x8x128xf32>
    %cst = arith.constant 0.000000e+00 : f32
    %14 = vector.broadcast %cst : f32 to vector<1x8x128xf32>
    %15 = arith.maximumf %13, %14 : vector<1x8x128xf32>
    %c1_11 = arith.constant 1 : index
    %c0_12 = arith.constant 0 : index
    %16 = memref.load %arg2[%c1_11, %c0_12] : memref<8x2xf32, #tpu.memory_space<smem>>
    %17 = vector.broadcast %16 : f32 to vector<1x8x128xf32>
    %18 = arith.mulf %1, %17 : vector<1x8x128xf32>
    %c1_13 = arith.constant 1 : index
    %c1_14 = arith.constant 1 : index
    %19 = memref.load %arg2[%c1_13, %c1_14] : memref<8x2xf32, #tpu.memory_space<smem>>
    %20 = vector.broadcast %19 : f32 to vector<1x8x128xf32>
    %21 = arith.mulf %3, %20 : vector<1x8x128xf32>
    %22 = arith.addf %18, %21 : vector<1x8x128xf32>
    %c1_15 = arith.constant 1 : index
    %23 = memref.load %arg3[%c1_15] : memref<8xf32, #tpu.memory_space<smem>>
    %24 = vector.broadcast %23 : f32 to vector<1x8x128xf32>
    %25 = arith.addf %22, %24 : vector<1x8x128xf32>
    %cst_16 = arith.constant 0.000000e+00 : f32
    %26 = vector.broadcast %cst_16 : f32 to vector<1x8x128xf32>
    %27 = arith.maximumf %25, %26 : vector<1x8x128xf32>
    %c2 = arith.constant 2 : index
    %c0_17 = arith.constant 0 : index
    %28 = memref.load %arg2[%c2, %c0_17] : memref<8x2xf32, #tpu.memory_space<smem>>
    %29 = vector.broadcast %28 : f32 to vector<1x8x128xf32>
    %30 = arith.mulf %1, %29 : vector<1x8x128xf32>
    %c2_18 = arith.constant 2 : index
    %c1_19 = arith.constant 1 : index
    %31 = memref.load %arg2[%c2_18, %c1_19] : memref<8x2xf32, #tpu.memory_space<smem>>
    %32 = vector.broadcast %31 : f32 to vector<1x8x128xf32>
    %33 = arith.mulf %3, %32 : vector<1x8x128xf32>
    %34 = arith.addf %30, %33 : vector<1x8x128xf32>
    %c2_20 = arith.constant 2 : index
    %35 = memref.load %arg3[%c2_20] : memref<8xf32, #tpu.memory_space<smem>>
    %36 = vector.broadcast %35 : f32 to vector<1x8x128xf32>
    %37 = arith.addf %34, %36 : vector<1x8x128xf32>
    %cst_21 = arith.constant 0.000000e+00 : f32
    %38 = vector.broadcast %cst_21 : f32 to vector<1x8x128xf32>
    %39 = arith.maximumf %37, %38 : vector<1x8x128xf32>
    %c3 = arith.constant 3 : index
    %c0_22 = arith.constant 0 : index
    %40 = memref.load %arg2[%c3, %c0_22] : memref<8x2xf32, #tpu.memory_space<smem>>
    %41 = vector.broadcast %40 : f32 to vector<1x8x128xf32>
    %42 = arith.mulf %1, %41 : vector<1x8x128xf32>
    %c3_23 = arith.constant 3 : index
    %c1_24 = arith.constant 1 : index
    %43 = memref.load %arg2[%c3_23, %c1_24] : memref<8x2xf32, #tpu.memory_space<smem>>
    %44 = vector.broadcast %43 : f32 to vector<1x8x128xf32>
    %45 = arith.mulf %3, %44 : vector<1x8x128xf32>
    %46 = arith.addf %42, %45 : vector<1x8x128xf32>
    %c3_25 = arith.constant 3 : index
    %47 = memref.load %arg3[%c3_25] : memref<8xf32, #tpu.memory_space<smem>>
    %48 = vector.broadcast %47 : f32 to vector<1x8x128xf32>
    %49 = arith.addf %46, %48 : vector<1x8x128xf32>
    %cst_26 = arith.constant 0.000000e+00 : f32
    %50 = vector.broadcast %cst_26 : f32 to vector<1x8x128xf32>
    %51 = arith.maximumf %49, %50 : vector<1x8x128xf32>
    %c4 = arith.constant 4 : index
    %c0_27 = arith.constant 0 : index
    %52 = memref.load %arg2[%c4, %c0_27] : memref<8x2xf32, #tpu.memory_space<smem>>
    %53 = vector.broadcast %52 : f32 to vector<1x8x128xf32>
    %54 = arith.mulf %1, %53 : vector<1x8x128xf32>
    %c4_28 = arith.constant 4 : index
    %c1_29 = arith.constant 1 : index
    %55 = memref.load %arg2[%c4_28, %c1_29] : memref<8x2xf32, #tpu.memory_space<smem>>
    %56 = vector.broadcast %55 : f32 to vector<1x8x128xf32>
    %57 = arith.mulf %3, %56 : vector<1x8x128xf32>
    %58 = arith.addf %54, %57 : vector<1x8x128xf32>
    %c4_30 = arith.constant 4 : index
    %59 = memref.load %arg3[%c4_30] : memref<8xf32, #tpu.memory_space<smem>>
    %60 = vector.broadcast %59 : f32 to vector<1x8x128xf32>
    %61 = arith.addf %58, %60 : vector<1x8x128xf32>
    %cst_31 = arith.constant 0.000000e+00 : f32
    %62 = vector.broadcast %cst_31 : f32 to vector<1x8x128xf32>
    %63 = arith.maximumf %61, %62 : vector<1x8x128xf32>
    %c5 = arith.constant 5 : index
    %c0_32 = arith.constant 0 : index
    %64 = memref.load %arg2[%c5, %c0_32] : memref<8x2xf32, #tpu.memory_space<smem>>
    %65 = vector.broadcast %64 : f32 to vector<1x8x128xf32>
    %66 = arith.mulf %1, %65 : vector<1x8x128xf32>
    %c5_33 = arith.constant 5 : index
    %c1_34 = arith.constant 1 : index
    %67 = memref.load %arg2[%c5_33, %c1_34] : memref<8x2xf32, #tpu.memory_space<smem>>
    %68 = vector.broadcast %67 : f32 to vector<1x8x128xf32>
    %69 = arith.mulf %3, %68 : vector<1x8x128xf32>
    %70 = arith.addf %66, %69 : vector<1x8x128xf32>
    %c5_35 = arith.constant 5 : index
    %71 = memref.load %arg3[%c5_35] : memref<8xf32, #tpu.memory_space<smem>>
    %72 = vector.broadcast %71 : f32 to vector<1x8x128xf32>
    %73 = arith.addf %70, %72 : vector<1x8x128xf32>
    %cst_36 = arith.constant 0.000000e+00 : f32
    %74 = vector.broadcast %cst_36 : f32 to vector<1x8x128xf32>
    %75 = arith.maximumf %73, %74 : vector<1x8x128xf32>
    %c6 = arith.constant 6 : index
    %c0_37 = arith.constant 0 : index
    %76 = memref.load %arg2[%c6, %c0_37] : memref<8x2xf32, #tpu.memory_space<smem>>
    %77 = vector.broadcast %76 : f32 to vector<1x8x128xf32>
    %78 = arith.mulf %1, %77 : vector<1x8x128xf32>
    %c6_38 = arith.constant 6 : index
    %c1_39 = arith.constant 1 : index
    %79 = memref.load %arg2[%c6_38, %c1_39] : memref<8x2xf32, #tpu.memory_space<smem>>
    %80 = vector.broadcast %79 : f32 to vector<1x8x128xf32>
    %81 = arith.mulf %3, %80 : vector<1x8x128xf32>
    %82 = arith.addf %78, %81 : vector<1x8x128xf32>
    %c6_40 = arith.constant 6 : index
    %83 = memref.load %arg3[%c6_40] : memref<8xf32, #tpu.memory_space<smem>>
    %84 = vector.broadcast %83 : f32 to vector<1x8x128xf32>
    %85 = arith.addf %82, %84 : vector<1x8x128xf32>
    %cst_41 = arith.constant 0.000000e+00 : f32
    %86 = vector.broadcast %cst_41 : f32 to vector<1x8x128xf32>
    %87 = arith.maximumf %85, %86 : vector<1x8x128xf32>
    %c7 = arith.constant 7 : index
    %c0_42 = arith.constant 0 : index
    %88 = memref.load %arg2[%c7, %c0_42] : memref<8x2xf32, #tpu.memory_space<smem>>
    %89 = vector.broadcast %88 : f32 to vector<1x8x128xf32>
    %90 = arith.mulf %1, %89 : vector<1x8x128xf32>
    %c7_43 = arith.constant 7 : index
    %c1_44 = arith.constant 1 : index
    %91 = memref.load %arg2[%c7_43, %c1_44] : memref<8x2xf32, #tpu.memory_space<smem>>
    %92 = vector.broadcast %91 : f32 to vector<1x8x128xf32>
    %93 = arith.mulf %3, %92 : vector<1x8x128xf32>
    %94 = arith.addf %90, %93 : vector<1x8x128xf32>
    %c7_45 = arith.constant 7 : index
    %95 = memref.load %arg3[%c7_45] : memref<8xf32, #tpu.memory_space<smem>>
    %96 = vector.broadcast %95 : f32 to vector<1x8x128xf32>
    %97 = arith.addf %94, %96 : vector<1x8x128xf32>
    %cst_46 = arith.constant 0.000000e+00 : f32
    %98 = vector.broadcast %cst_46 : f32 to vector<1x8x128xf32>
    %99 = arith.maximumf %97, %98 : vector<1x8x128xf32>
    %c0_47 = arith.constant 0 : index
    %c0_48 = arith.constant 0 : index
    %100 = memref.load %arg4[%c0_47, %c0_48] : memref<8x8xf32, #tpu.memory_space<smem>>
    %101 = vector.broadcast %100 : f32 to vector<1x8x128xf32>
    %102 = arith.mulf %15, %101 : vector<1x8x128xf32>
    %c0_49 = arith.constant 0 : index
    %c1_50 = arith.constant 1 : index
    %103 = memref.load %arg4[%c0_49, %c1_50] : memref<8x8xf32, #tpu.memory_space<smem>>
    %104 = vector.broadcast %103 : f32 to vector<1x8x128xf32>
    %105 = arith.mulf %27, %104 : vector<1x8x128xf32>
    %c0_51 = arith.constant 0 : index
    %c2_52 = arith.constant 2 : index
    %106 = memref.load %arg4[%c0_51, %c2_52] : memref<8x8xf32, #tpu.memory_space<smem>>
    %107 = vector.broadcast %106 : f32 to vector<1x8x128xf32>
    %108 = arith.mulf %39, %107 : vector<1x8x128xf32>
    %109 = arith.addf %102, %108 : vector<1x8x128xf32>
    %c0_53 = arith.constant 0 : index
    %c3_54 = arith.constant 3 : index
    %110 = memref.load %arg4[%c0_53, %c3_54] : memref<8x8xf32, #tpu.memory_space<smem>>
    %111 = vector.broadcast %110 : f32 to vector<1x8x128xf32>
    %112 = arith.mulf %51, %111 : vector<1x8x128xf32>
    %113 = arith.addf %105, %112 : vector<1x8x128xf32>
    %c0_55 = arith.constant 0 : index
    %c4_56 = arith.constant 4 : index
    %114 = memref.load %arg4[%c0_55, %c4_56] : memref<8x8xf32, #tpu.memory_space<smem>>
    %115 = vector.broadcast %114 : f32 to vector<1x8x128xf32>
    %116 = arith.mulf %63, %115 : vector<1x8x128xf32>
    %117 = arith.addf %109, %116 : vector<1x8x128xf32>
    %c0_57 = arith.constant 0 : index
    %c5_58 = arith.constant 5 : index
    %118 = memref.load %arg4[%c0_57, %c5_58] : memref<8x8xf32, #tpu.memory_space<smem>>
    %119 = vector.broadcast %118 : f32 to vector<1x8x128xf32>
    %120 = arith.mulf %75, %119 : vector<1x8x128xf32>
    %121 = arith.addf %113, %120 : vector<1x8x128xf32>
    %c0_59 = arith.constant 0 : index
    %c6_60 = arith.constant 6 : index
    %122 = memref.load %arg4[%c0_59, %c6_60] : memref<8x8xf32, #tpu.memory_space<smem>>
    %123 = vector.broadcast %122 : f32 to vector<1x8x128xf32>
    %124 = arith.mulf %87, %123 : vector<1x8x128xf32>
    %125 = arith.addf %117, %124 : vector<1x8x128xf32>
    %c0_61 = arith.constant 0 : index
    %c7_62 = arith.constant 7 : index
    %126 = memref.load %arg4[%c0_61, %c7_62] : memref<8x8xf32, #tpu.memory_space<smem>>
    %127 = vector.broadcast %126 : f32 to vector<1x8x128xf32>
    %128 = arith.mulf %99, %127 : vector<1x8x128xf32>
    %129 = arith.addf %121, %128 : vector<1x8x128xf32>
    %130 = arith.addf %125, %129 : vector<1x8x128xf32>
    %c0_63 = arith.constant 0 : index
    %131 = memref.load %arg5[%c0_63] : memref<8xf32, #tpu.memory_space<smem>>
    %132 = vector.broadcast %131 : f32 to vector<1x8x128xf32>
    %133 = arith.addf %130, %132 : vector<1x8x128xf32>
    %cst_64 = arith.constant 0.000000e+00 : f32
    %134 = vector.broadcast %cst_64 : f32 to vector<1x8x128xf32>
    %135 = arith.maximumf %133, %134 : vector<1x8x128xf32>
    %c1_65 = arith.constant 1 : index
    %c0_66 = arith.constant 0 : index
    %136 = memref.load %arg4[%c1_65, %c0_66] : memref<8x8xf32, #tpu.memory_space<smem>>
    %137 = vector.broadcast %136 : f32 to vector<1x8x128xf32>
    %138 = arith.mulf %15, %137 : vector<1x8x128xf32>
    %c1_67 = arith.constant 1 : index
    %c1_68 = arith.constant 1 : index
    %139 = memref.load %arg4[%c1_67, %c1_68] : memref<8x8xf32, #tpu.memory_space<smem>>
    %140 = vector.broadcast %139 : f32 to vector<1x8x128xf32>
    %141 = arith.mulf %27, %140 : vector<1x8x128xf32>
    %c1_69 = arith.constant 1 : index
    %c2_70 = arith.constant 2 : index
    %142 = memref.load %arg4[%c1_69, %c2_70] : memref<8x8xf32, #tpu.memory_space<smem>>
    %143 = vector.broadcast %142 : f32 to vector<1x8x128xf32>
    %144 = arith.mulf %39, %143 : vector<1x8x128xf32>
    %145 = arith.addf %138, %144 : vector<1x8x128xf32>
    %c1_71 = arith.constant 1 : index
    %c3_72 = arith.constant 3 : index
    %146 = memref.load %arg4[%c1_71, %c3_72] : memref<8x8xf32, #tpu.memory_space<smem>>
    %147 = vector.broadcast %146 : f32 to vector<1x8x128xf32>
    %148 = arith.mulf %51, %147 : vector<1x8x128xf32>
    %149 = arith.addf %141, %148 : vector<1x8x128xf32>
    %c1_73 = arith.constant 1 : index
    %c4_74 = arith.constant 4 : index
    %150 = memref.load %arg4[%c1_73, %c4_74] : memref<8x8xf32, #tpu.memory_space<smem>>
    %151 = vector.broadcast %150 : f32 to vector<1x8x128xf32>
    %152 = arith.mulf %63, %151 : vector<1x8x128xf32>
    %153 = arith.addf %145, %152 : vector<1x8x128xf32>
    %c1_75 = arith.constant 1 : index
    %c5_76 = arith.constant 5 : index
    %154 = memref.load %arg4[%c1_75, %c5_76] : memref<8x8xf32, #tpu.memory_space<smem>>
    %155 = vector.broadcast %154 : f32 to vector<1x8x128xf32>
    %156 = arith.mulf %75, %155 : vector<1x8x128xf32>
    %157 = arith.addf %149, %156 : vector<1x8x128xf32>
    %c1_77 = arith.constant 1 : index
    %c6_78 = arith.constant 6 : index
    %158 = memref.load %arg4[%c1_77, %c6_78] : memref<8x8xf32, #tpu.memory_space<smem>>
    %159 = vector.broadcast %158 : f32 to vector<1x8x128xf32>
    %160 = arith.mulf %87, %159 : vector<1x8x128xf32>
    %161 = arith.addf %153, %160 : vector<1x8x128xf32>
    %c1_79 = arith.constant 1 : index
    %c7_80 = arith.constant 7 : index
    %162 = memref.load %arg4[%c1_79, %c7_80] : memref<8x8xf32, #tpu.memory_space<smem>>
    %163 = vector.broadcast %162 : f32 to vector<1x8x128xf32>
    %164 = arith.mulf %99, %163 : vector<1x8x128xf32>
    %165 = arith.addf %157, %164 : vector<1x8x128xf32>
    %166 = arith.addf %161, %165 : vector<1x8x128xf32>
    %c1_81 = arith.constant 1 : index
    %167 = memref.load %arg5[%c1_81] : memref<8xf32, #tpu.memory_space<smem>>
    %168 = vector.broadcast %167 : f32 to vector<1x8x128xf32>
    %169 = arith.addf %166, %168 : vector<1x8x128xf32>
    %cst_82 = arith.constant 0.000000e+00 : f32
    %170 = vector.broadcast %cst_82 : f32 to vector<1x8x128xf32>
    %171 = arith.maximumf %169, %170 : vector<1x8x128xf32>
    %c2_83 = arith.constant 2 : index
    %c0_84 = arith.constant 0 : index
    %172 = memref.load %arg4[%c2_83, %c0_84] : memref<8x8xf32, #tpu.memory_space<smem>>
    %173 = vector.broadcast %172 : f32 to vector<1x8x128xf32>
    %174 = arith.mulf %15, %173 : vector<1x8x128xf32>
    %c2_85 = arith.constant 2 : index
    %c1_86 = arith.constant 1 : index
    %175 = memref.load %arg4[%c2_85, %c1_86] : memref<8x8xf32, #tpu.memory_space<smem>>
    %176 = vector.broadcast %175 : f32 to vector<1x8x128xf32>
    %177 = arith.mulf %27, %176 : vector<1x8x128xf32>
    %c2_87 = arith.constant 2 : index
    %c2_88 = arith.constant 2 : index
    %178 = memref.load %arg4[%c2_87, %c2_88] : memref<8x8xf32, #tpu.memory_space<smem>>
    %179 = vector.broadcast %178 : f32 to vector<1x8x128xf32>
    %180 = arith.mulf %39, %179 : vector<1x8x128xf32>
    %181 = arith.addf %174, %180 : vector<1x8x128xf32>
    %c2_89 = arith.constant 2 : index
    %c3_90 = arith.constant 3 : index
    %182 = memref.load %arg4[%c2_89, %c3_90] : memref<8x8xf32, #tpu.memory_space<smem>>
    %183 = vector.broadcast %182 : f32 to vector<1x8x128xf32>
    %184 = arith.mulf %51, %183 : vector<1x8x128xf32>
    %185 = arith.addf %177, %184 : vector<1x8x128xf32>
    %c2_91 = arith.constant 2 : index
    %c4_92 = arith.constant 4 : index
    %186 = memref.load %arg4[%c2_91, %c4_92] : memref<8x8xf32, #tpu.memory_space<smem>>
    %187 = vector.broadcast %186 : f32 to vector<1x8x128xf32>
    %188 = arith.mulf %63, %187 : vector<1x8x128xf32>
    %189 = arith.addf %181, %188 : vector<1x8x128xf32>
    %c2_93 = arith.constant 2 : index
    %c5_94 = arith.constant 5 : index
    %190 = memref.load %arg4[%c2_93, %c5_94] : memref<8x8xf32, #tpu.memory_space<smem>>
    %191 = vector.broadcast %190 : f32 to vector<1x8x128xf32>
    %192 = arith.mulf %75, %191 : vector<1x8x128xf32>
    %193 = arith.addf %185, %192 : vector<1x8x128xf32>
    %c2_95 = arith.constant 2 : index
    %c6_96 = arith.constant 6 : index
    %194 = memref.load %arg4[%c2_95, %c6_96] : memref<8x8xf32, #tpu.memory_space<smem>>
    %195 = vector.broadcast %194 : f32 to vector<1x8x128xf32>
    %196 = arith.mulf %87, %195 : vector<1x8x128xf32>
    %197 = arith.addf %189, %196 : vector<1x8x128xf32>
    %c2_97 = arith.constant 2 : index
    %c7_98 = arith.constant 7 : index
    %198 = memref.load %arg4[%c2_97, %c7_98] : memref<8x8xf32, #tpu.memory_space<smem>>
    %199 = vector.broadcast %198 : f32 to vector<1x8x128xf32>
    %200 = arith.mulf %99, %199 : vector<1x8x128xf32>
    %201 = arith.addf %193, %200 : vector<1x8x128xf32>
    %202 = arith.addf %197, %201 : vector<1x8x128xf32>
    %c2_99 = arith.constant 2 : index
    %203 = memref.load %arg5[%c2_99] : memref<8xf32, #tpu.memory_space<smem>>
    %204 = vector.broadcast %203 : f32 to vector<1x8x128xf32>
    %205 = arith.addf %202, %204 : vector<1x8x128xf32>
    %cst_100 = arith.constant 0.000000e+00 : f32
    %206 = vector.broadcast %cst_100 : f32 to vector<1x8x128xf32>
    %207 = arith.maximumf %205, %206 : vector<1x8x128xf32>
    %c3_101 = arith.constant 3 : index
    %c0_102 = arith.constant 0 : index
    %208 = memref.load %arg4[%c3_101, %c0_102] : memref<8x8xf32, #tpu.memory_space<smem>>
    %209 = vector.broadcast %208 : f32 to vector<1x8x128xf32>
    %210 = arith.mulf %15, %209 : vector<1x8x128xf32>
    %c3_103 = arith.constant 3 : index
    %c1_104 = arith.constant 1 : index
    %211 = memref.load %arg4[%c3_103, %c1_104] : memref<8x8xf32, #tpu.memory_space<smem>>
    %212 = vector.broadcast %211 : f32 to vector<1x8x128xf32>
    %213 = arith.mulf %27, %212 : vector<1x8x128xf32>
    %c3_105 = arith.constant 3 : index
    %c2_106 = arith.constant 2 : index
    %214 = memref.load %arg4[%c3_105, %c2_106] : memref<8x8xf32, #tpu.memory_space<smem>>
    %215 = vector.broadcast %214 : f32 to vector<1x8x128xf32>
    %216 = arith.mulf %39, %215 : vector<1x8x128xf32>
    %217 = arith.addf %210, %216 : vector<1x8x128xf32>
    %c3_107 = arith.constant 3 : index
    %c3_108 = arith.constant 3 : index
    %218 = memref.load %arg4[%c3_107, %c3_108] : memref<8x8xf32, #tpu.memory_space<smem>>
    %219 = vector.broadcast %218 : f32 to vector<1x8x128xf32>
    %220 = arith.mulf %51, %219 : vector<1x8x128xf32>
    %221 = arith.addf %213, %220 : vector<1x8x128xf32>
    %c3_109 = arith.constant 3 : index
    %c4_110 = arith.constant 4 : index
    %222 = memref.load %arg4[%c3_109, %c4_110] : memref<8x8xf32, #tpu.memory_space<smem>>
    %223 = vector.broadcast %222 : f32 to vector<1x8x128xf32>
    %224 = arith.mulf %63, %223 : vector<1x8x128xf32>
    %225 = arith.addf %217, %224 : vector<1x8x128xf32>
    %c3_111 = arith.constant 3 : index
    %c5_112 = arith.constant 5 : index
    %226 = memref.load %arg4[%c3_111, %c5_112] : memref<8x8xf32, #tpu.memory_space<smem>>
    %227 = vector.broadcast %226 : f32 to vector<1x8x128xf32>
    %228 = arith.mulf %75, %227 : vector<1x8x128xf32>
    %229 = arith.addf %221, %228 : vector<1x8x128xf32>
    %c3_113 = arith.constant 3 : index
    %c6_114 = arith.constant 6 : index
    %230 = memref.load %arg4[%c3_113, %c6_114] : memref<8x8xf32, #tpu.memory_space<smem>>
    %231 = vector.broadcast %230 : f32 to vector<1x8x128xf32>
    %232 = arith.mulf %87, %231 : vector<1x8x128xf32>
    %233 = arith.addf %225, %232 : vector<1x8x128xf32>
    %c3_115 = arith.constant 3 : index
    %c7_116 = arith.constant 7 : index
    %234 = memref.load %arg4[%c3_115, %c7_116] : memref<8x8xf32, #tpu.memory_space<smem>>
    %235 = vector.broadcast %234 : f32 to vector<1x8x128xf32>
    %236 = arith.mulf %99, %235 : vector<1x8x128xf32>
    %237 = arith.addf %229, %236 : vector<1x8x128xf32>
    %238 = arith.addf %233, %237 : vector<1x8x128xf32>
    %c3_117 = arith.constant 3 : index
    %239 = memref.load %arg5[%c3_117] : memref<8xf32, #tpu.memory_space<smem>>
    %240 = vector.broadcast %239 : f32 to vector<1x8x128xf32>
    %241 = arith.addf %238, %240 : vector<1x8x128xf32>
    %cst_118 = arith.constant 0.000000e+00 : f32
    %242 = vector.broadcast %cst_118 : f32 to vector<1x8x128xf32>
    %243 = arith.maximumf %241, %242 : vector<1x8x128xf32>
    %c4_119 = arith.constant 4 : index
    %c0_120 = arith.constant 0 : index
    %244 = memref.load %arg4[%c4_119, %c0_120] : memref<8x8xf32, #tpu.memory_space<smem>>
    %245 = vector.broadcast %244 : f32 to vector<1x8x128xf32>
    %246 = arith.mulf %15, %245 : vector<1x8x128xf32>
    %c4_121 = arith.constant 4 : index
    %c1_122 = arith.constant 1 : index
    %247 = memref.load %arg4[%c4_121, %c1_122] : memref<8x8xf32, #tpu.memory_space<smem>>
    %248 = vector.broadcast %247 : f32 to vector<1x8x128xf32>
    %249 = arith.mulf %27, %248 : vector<1x8x128xf32>
    %c4_123 = arith.constant 4 : index
    %c2_124 = arith.constant 2 : index
    %250 = memref.load %arg4[%c4_123, %c2_124] : memref<8x8xf32, #tpu.memory_space<smem>>
    %251 = vector.broadcast %250 : f32 to vector<1x8x128xf32>
    %252 = arith.mulf %39, %251 : vector<1x8x128xf32>
    %253 = arith.addf %246, %252 : vector<1x8x128xf32>
    %c4_125 = arith.constant 4 : index
    %c3_126 = arith.constant 3 : index
    %254 = memref.load %arg4[%c4_125, %c3_126] : memref<8x8xf32, #tpu.memory_space<smem>>
    %255 = vector.broadcast %254 : f32 to vector<1x8x128xf32>
    %256 = arith.mulf %51, %255 : vector<1x8x128xf32>
    %257 = arith.addf %249, %256 : vector<1x8x128xf32>
    %c4_127 = arith.constant 4 : index
    %c4_128 = arith.constant 4 : index
    %258 = memref.load %arg4[%c4_127, %c4_128] : memref<8x8xf32, #tpu.memory_space<smem>>
    %259 = vector.broadcast %258 : f32 to vector<1x8x128xf32>
    %260 = arith.mulf %63, %259 : vector<1x8x128xf32>
    %261 = arith.addf %253, %260 : vector<1x8x128xf32>
    %c4_129 = arith.constant 4 : index
    %c5_130 = arith.constant 5 : index
    %262 = memref.load %arg4[%c4_129, %c5_130] : memref<8x8xf32, #tpu.memory_space<smem>>
    %263 = vector.broadcast %262 : f32 to vector<1x8x128xf32>
    %264 = arith.mulf %75, %263 : vector<1x8x128xf32>
    %265 = arith.addf %257, %264 : vector<1x8x128xf32>
    %c4_131 = arith.constant 4 : index
    %c6_132 = arith.constant 6 : index
    %266 = memref.load %arg4[%c4_131, %c6_132] : memref<8x8xf32, #tpu.memory_space<smem>>
    %267 = vector.broadcast %266 : f32 to vector<1x8x128xf32>
    %268 = arith.mulf %87, %267 : vector<1x8x128xf32>
    %269 = arith.addf %261, %268 : vector<1x8x128xf32>
    %c4_133 = arith.constant 4 : index
    %c7_134 = arith.constant 7 : index
    %270 = memref.load %arg4[%c4_133, %c7_134] : memref<8x8xf32, #tpu.memory_space<smem>>
    %271 = vector.broadcast %270 : f32 to vector<1x8x128xf32>
    %272 = arith.mulf %99, %271 : vector<1x8x128xf32>
    %273 = arith.addf %265, %272 : vector<1x8x128xf32>
    %274 = arith.addf %269, %273 : vector<1x8x128xf32>
    %c4_135 = arith.constant 4 : index
    %275 = memref.load %arg5[%c4_135] : memref<8xf32, #tpu.memory_space<smem>>
    %276 = vector.broadcast %275 : f32 to vector<1x8x128xf32>
    %277 = arith.addf %274, %276 : vector<1x8x128xf32>
    %cst_136 = arith.constant 0.000000e+00 : f32
    %278 = vector.broadcast %cst_136 : f32 to vector<1x8x128xf32>
    %279 = arith.maximumf %277, %278 : vector<1x8x128xf32>
    %c5_137 = arith.constant 5 : index
    %c0_138 = arith.constant 0 : index
    %280 = memref.load %arg4[%c5_137, %c0_138] : memref<8x8xf32, #tpu.memory_space<smem>>
    %281 = vector.broadcast %280 : f32 to vector<1x8x128xf32>
    %282 = arith.mulf %15, %281 : vector<1x8x128xf32>
    %c5_139 = arith.constant 5 : index
    %c1_140 = arith.constant 1 : index
    %283 = memref.load %arg4[%c5_139, %c1_140] : memref<8x8xf32, #tpu.memory_space<smem>>
    %284 = vector.broadcast %283 : f32 to vector<1x8x128xf32>
    %285 = arith.mulf %27, %284 : vector<1x8x128xf32>
    %c5_141 = arith.constant 5 : index
    %c2_142 = arith.constant 2 : index
    %286 = memref.load %arg4[%c5_141, %c2_142] : memref<8x8xf32, #tpu.memory_space<smem>>
    %287 = vector.broadcast %286 : f32 to vector<1x8x128xf32>
    %288 = arith.mulf %39, %287 : vector<1x8x128xf32>
    %289 = arith.addf %282, %288 : vector<1x8x128xf32>
    %c5_143 = arith.constant 5 : index
    %c3_144 = arith.constant 3 : index
    %290 = memref.load %arg4[%c5_143, %c3_144] : memref<8x8xf32, #tpu.memory_space<smem>>
    %291 = vector.broadcast %290 : f32 to vector<1x8x128xf32>
    %292 = arith.mulf %51, %291 : vector<1x8x128xf32>
    %293 = arith.addf %285, %292 : vector<1x8x128xf32>
    %c5_145 = arith.constant 5 : index
    %c4_146 = arith.constant 4 : index
    %294 = memref.load %arg4[%c5_145, %c4_146] : memref<8x8xf32, #tpu.memory_space<smem>>
    %295 = vector.broadcast %294 : f32 to vector<1x8x128xf32>
    %296 = arith.mulf %63, %295 : vector<1x8x128xf32>
    %297 = arith.addf %289, %296 : vector<1x8x128xf32>
    %c5_147 = arith.constant 5 : index
    %c5_148 = arith.constant 5 : index
    %298 = memref.load %arg4[%c5_147, %c5_148] : memref<8x8xf32, #tpu.memory_space<smem>>
    %299 = vector.broadcast %298 : f32 to vector<1x8x128xf32>
    %300 = arith.mulf %75, %299 : vector<1x8x128xf32>
    %301 = arith.addf %293, %300 : vector<1x8x128xf32>
    %c5_149 = arith.constant 5 : index
    %c6_150 = arith.constant 6 : index
    %302 = memref.load %arg4[%c5_149, %c6_150] : memref<8x8xf32, #tpu.memory_space<smem>>
    %303 = vector.broadcast %302 : f32 to vector<1x8x128xf32>
    %304 = arith.mulf %87, %303 : vector<1x8x128xf32>
    %305 = arith.addf %297, %304 : vector<1x8x128xf32>
    %c5_151 = arith.constant 5 : index
    %c7_152 = arith.constant 7 : index
    %306 = memref.load %arg4[%c5_151, %c7_152] : memref<8x8xf32, #tpu.memory_space<smem>>
    %307 = vector.broadcast %306 : f32 to vector<1x8x128xf32>
    %308 = arith.mulf %99, %307 : vector<1x8x128xf32>
    %309 = arith.addf %301, %308 : vector<1x8x128xf32>
    %310 = arith.addf %305, %309 : vector<1x8x128xf32>
    %c5_153 = arith.constant 5 : index
    %311 = memref.load %arg5[%c5_153] : memref<8xf32, #tpu.memory_space<smem>>
    %312 = vector.broadcast %311 : f32 to vector<1x8x128xf32>
    %313 = arith.addf %310, %312 : vector<1x8x128xf32>
    %cst_154 = arith.constant 0.000000e+00 : f32
    %314 = vector.broadcast %cst_154 : f32 to vector<1x8x128xf32>
    %315 = arith.maximumf %313, %314 : vector<1x8x128xf32>
    %c6_155 = arith.constant 6 : index
    %c0_156 = arith.constant 0 : index
    %316 = memref.load %arg4[%c6_155, %c0_156] : memref<8x8xf32, #tpu.memory_space<smem>>
    %317 = vector.broadcast %316 : f32 to vector<1x8x128xf32>
    %318 = arith.mulf %15, %317 : vector<1x8x128xf32>
    %c6_157 = arith.constant 6 : index
    %c1_158 = arith.constant 1 : index
    %319 = memref.load %arg4[%c6_157, %c1_158] : memref<8x8xf32, #tpu.memory_space<smem>>
    %320 = vector.broadcast %319 : f32 to vector<1x8x128xf32>
    %321 = arith.mulf %27, %320 : vector<1x8x128xf32>
    %c6_159 = arith.constant 6 : index
    %c2_160 = arith.constant 2 : index
    %322 = memref.load %arg4[%c6_159, %c2_160] : memref<8x8xf32, #tpu.memory_space<smem>>
    %323 = vector.broadcast %322 : f32 to vector<1x8x128xf32>
    %324 = arith.mulf %39, %323 : vector<1x8x128xf32>
    %325 = arith.addf %318, %324 : vector<1x8x128xf32>
    %c6_161 = arith.constant 6 : index
    %c3_162 = arith.constant 3 : index
    %326 = memref.load %arg4[%c6_161, %c3_162] : memref<8x8xf32, #tpu.memory_space<smem>>
    %327 = vector.broadcast %326 : f32 to vector<1x8x128xf32>
    %328 = arith.mulf %51, %327 : vector<1x8x128xf32>
    %329 = arith.addf %321, %328 : vector<1x8x128xf32>
    %c6_163 = arith.constant 6 : index
    %c4_164 = arith.constant 4 : index
    %330 = memref.load %arg4[%c6_163, %c4_164] : memref<8x8xf32, #tpu.memory_space<smem>>
    %331 = vector.broadcast %330 : f32 to vector<1x8x128xf32>
    %332 = arith.mulf %63, %331 : vector<1x8x128xf32>
    %333 = arith.addf %325, %332 : vector<1x8x128xf32>
    %c6_165 = arith.constant 6 : index
    %c5_166 = arith.constant 5 : index
    %334 = memref.load %arg4[%c6_165, %c5_166] : memref<8x8xf32, #tpu.memory_space<smem>>
    %335 = vector.broadcast %334 : f32 to vector<1x8x128xf32>
    %336 = arith.mulf %75, %335 : vector<1x8x128xf32>
    %337 = arith.addf %329, %336 : vector<1x8x128xf32>
    %c6_167 = arith.constant 6 : index
    %c6_168 = arith.constant 6 : index
    %338 = memref.load %arg4[%c6_167, %c6_168] : memref<8x8xf32, #tpu.memory_space<smem>>
    %339 = vector.broadcast %338 : f32 to vector<1x8x128xf32>
    %340 = arith.mulf %87, %339 : vector<1x8x128xf32>
    %341 = arith.addf %333, %340 : vector<1x8x128xf32>
    %c6_169 = arith.constant 6 : index
    %c7_170 = arith.constant 7 : index
    %342 = memref.load %arg4[%c6_169, %c7_170] : memref<8x8xf32, #tpu.memory_space<smem>>
    %343 = vector.broadcast %342 : f32 to vector<1x8x128xf32>
    %344 = arith.mulf %99, %343 : vector<1x8x128xf32>
    %345 = arith.addf %337, %344 : vector<1x8x128xf32>
    %346 = arith.addf %341, %345 : vector<1x8x128xf32>
    %c6_171 = arith.constant 6 : index
    %347 = memref.load %arg5[%c6_171] : memref<8xf32, #tpu.memory_space<smem>>
    %348 = vector.broadcast %347 : f32 to vector<1x8x128xf32>
    %349 = arith.addf %346, %348 : vector<1x8x128xf32>
    %cst_172 = arith.constant 0.000000e+00 : f32
    %350 = vector.broadcast %cst_172 : f32 to vector<1x8x128xf32>
    %351 = arith.maximumf %349, %350 : vector<1x8x128xf32>
    %c7_173 = arith.constant 7 : index
    %c0_174 = arith.constant 0 : index
    %352 = memref.load %arg4[%c7_173, %c0_174] : memref<8x8xf32, #tpu.memory_space<smem>>
    %353 = vector.broadcast %352 : f32 to vector<1x8x128xf32>
    %354 = arith.mulf %15, %353 : vector<1x8x128xf32>
    %c7_175 = arith.constant 7 : index
    %c1_176 = arith.constant 1 : index
    %355 = memref.load %arg4[%c7_175, %c1_176] : memref<8x8xf32, #tpu.memory_space<smem>>
    %356 = vector.broadcast %355 : f32 to vector<1x8x128xf32>
    %357 = arith.mulf %27, %356 : vector<1x8x128xf32>
    %c7_177 = arith.constant 7 : index
    %c2_178 = arith.constant 2 : index
    %358 = memref.load %arg4[%c7_177, %c2_178] : memref<8x8xf32, #tpu.memory_space<smem>>
    %359 = vector.broadcast %358 : f32 to vector<1x8x128xf32>
    %360 = arith.mulf %39, %359 : vector<1x8x128xf32>
    %361 = arith.addf %354, %360 : vector<1x8x128xf32>
    %c7_179 = arith.constant 7 : index
    %c3_180 = arith.constant 3 : index
    %362 = memref.load %arg4[%c7_179, %c3_180] : memref<8x8xf32, #tpu.memory_space<smem>>
    %363 = vector.broadcast %362 : f32 to vector<1x8x128xf32>
    %364 = arith.mulf %51, %363 : vector<1x8x128xf32>
    %365 = arith.addf %357, %364 : vector<1x8x128xf32>
    %c7_181 = arith.constant 7 : index
    %c4_182 = arith.constant 4 : index
    %366 = memref.load %arg4[%c7_181, %c4_182] : memref<8x8xf32, #tpu.memory_space<smem>>
    %367 = vector.broadcast %366 : f32 to vector<1x8x128xf32>
    %368 = arith.mulf %63, %367 : vector<1x8x128xf32>
    %369 = arith.addf %361, %368 : vector<1x8x128xf32>
    %c7_183 = arith.constant 7 : index
    %c5_184 = arith.constant 5 : index
    %370 = memref.load %arg4[%c7_183, %c5_184] : memref<8x8xf32, #tpu.memory_space<smem>>
    %371 = vector.broadcast %370 : f32 to vector<1x8x128xf32>
    %372 = arith.mulf %75, %371 : vector<1x8x128xf32>
    %373 = arith.addf %365, %372 : vector<1x8x128xf32>
    %c7_185 = arith.constant 7 : index
    %c6_186 = arith.constant 6 : index
    %374 = memref.load %arg4[%c7_185, %c6_186] : memref<8x8xf32, #tpu.memory_space<smem>>
    %375 = vector.broadcast %374 : f32 to vector<1x8x128xf32>
    %376 = arith.mulf %87, %375 : vector<1x8x128xf32>
    %377 = arith.addf %369, %376 : vector<1x8x128xf32>
    %c7_187 = arith.constant 7 : index
    %c7_188 = arith.constant 7 : index
    %378 = memref.load %arg4[%c7_187, %c7_188] : memref<8x8xf32, #tpu.memory_space<smem>>
    %379 = vector.broadcast %378 : f32 to vector<1x8x128xf32>
    %380 = arith.mulf %99, %379 : vector<1x8x128xf32>
    %381 = arith.addf %373, %380 : vector<1x8x128xf32>
    %382 = arith.addf %377, %381 : vector<1x8x128xf32>
    %c7_189 = arith.constant 7 : index
    %383 = memref.load %arg5[%c7_189] : memref<8xf32, #tpu.memory_space<smem>>
    %384 = vector.broadcast %383 : f32 to vector<1x8x128xf32>
    %385 = arith.addf %382, %384 : vector<1x8x128xf32>
    %cst_190 = arith.constant 0.000000e+00 : f32
    %386 = vector.broadcast %cst_190 : f32 to vector<1x8x128xf32>
    %387 = arith.maximumf %385, %386 : vector<1x8x128xf32>
    %c0_191 = arith.constant 0 : index
    %c0_192 = arith.constant 0 : index
    %388 = memref.load %arg6[%c0_191, %c0_192] : memref<4x8xf32, #tpu.memory_space<smem>>
    %389 = vector.broadcast %388 : f32 to vector<1x8x128xf32>
    %390 = arith.mulf %135, %389 : vector<1x8x128xf32>
    %c0_193 = arith.constant 0 : index
    %c1_194 = arith.constant 1 : index
    %391 = memref.load %arg6[%c0_193, %c1_194] : memref<4x8xf32, #tpu.memory_space<smem>>
    %392 = vector.broadcast %391 : f32 to vector<1x8x128xf32>
    %393 = arith.mulf %171, %392 : vector<1x8x128xf32>
    %c0_195 = arith.constant 0 : index
    %c2_196 = arith.constant 2 : index
    %394 = memref.load %arg6[%c0_195, %c2_196] : memref<4x8xf32, #tpu.memory_space<smem>>
    %395 = vector.broadcast %394 : f32 to vector<1x8x128xf32>
    %396 = arith.mulf %207, %395 : vector<1x8x128xf32>
    %397 = arith.addf %390, %396 : vector<1x8x128xf32>
    %c0_197 = arith.constant 0 : index
    %c3_198 = arith.constant 3 : index
    %398 = memref.load %arg6[%c0_197, %c3_198] : memref<4x8xf32, #tpu.memory_space<smem>>
    %399 = vector.broadcast %398 : f32 to vector<1x8x128xf32>
    %400 = arith.mulf %243, %399 : vector<1x8x128xf32>
    %401 = arith.addf %393, %400 : vector<1x8x128xf32>
    %c0_199 = arith.constant 0 : index
    %c4_200 = arith.constant 4 : index
    %402 = memref.load %arg6[%c0_199, %c4_200] : memref<4x8xf32, #tpu.memory_space<smem>>
    %403 = vector.broadcast %402 : f32 to vector<1x8x128xf32>
    %404 = arith.mulf %279, %403 : vector<1x8x128xf32>
    %405 = arith.addf %397, %404 : vector<1x8x128xf32>
    %c0_201 = arith.constant 0 : index
    %c5_202 = arith.constant 5 : index
    %406 = memref.load %arg6[%c0_201, %c5_202] : memref<4x8xf32, #tpu.memory_space<smem>>
    %407 = vector.broadcast %406 : f32 to vector<1x8x128xf32>
    %408 = arith.mulf %315, %407 : vector<1x8x128xf32>
    %409 = arith.addf %401, %408 : vector<1x8x128xf32>
    %c0_203 = arith.constant 0 : index
    %c6_204 = arith.constant 6 : index
    %410 = memref.load %arg6[%c0_203, %c6_204] : memref<4x8xf32, #tpu.memory_space<smem>>
    %411 = vector.broadcast %410 : f32 to vector<1x8x128xf32>
    %412 = arith.mulf %351, %411 : vector<1x8x128xf32>
    %413 = arith.addf %405, %412 : vector<1x8x128xf32>
    %c0_205 = arith.constant 0 : index
    %c7_206 = arith.constant 7 : index
    %414 = memref.load %arg6[%c0_205, %c7_206] : memref<4x8xf32, #tpu.memory_space<smem>>
    %415 = vector.broadcast %414 : f32 to vector<1x8x128xf32>
    %416 = arith.mulf %387, %415 : vector<1x8x128xf32>
    %417 = arith.addf %409, %416 : vector<1x8x128xf32>
    %418 = arith.addf %413, %417 : vector<1x8x128xf32>
    %c0_207 = arith.constant 0 : index
    %419 = memref.load %arg7[%c0_207] : memref<4xf32, #tpu.memory_space<smem>>
    %420 = vector.broadcast %419 : f32 to vector<1x8x128xf32>
    %421 = arith.addf %418, %420 : vector<1x8x128xf32>
    %c0_208 = arith.constant 0 : index
    %c0_209 = arith.constant 0 : index
    %c0_210 = arith.constant 0 : index
    %c0_211 = arith.constant 0 : index
    %422 = vector.load %arg8[%c0_208, %c0_209, %c0_210, %c0_211] : memref<4x1x8x128xf32, #tpu.memory_space<vmem>>, vector<1x1x8x128xf32>
    %423 = vector.shape_cast %422 : vector<1x1x8x128xf32> to vector<1x8x128xf32>
    %424 = vector.shape_cast %421 : vector<1x8x128xf32> to vector<1x1x8x128xf32>
    tpu.vector_store %arg8[%c0_208, %c0_209, %c0_210, %c0_211], %424 {strides = array<i32>} : memref<4x1x8x128xf32, #tpu.memory_space<vmem>>, vector<1x1x8x128xf32>,
    %c1_212 = arith.constant 1 : index
    %c0_213 = arith.constant 0 : index
    %425 = memref.load %arg6[%c1_212, %c0_213] : memref<4x8xf32, #tpu.memory_space<smem>>
    %426 = vector.broadcast %425 : f32 to vector<1x8x128xf32>
    %427 = arith.mulf %135, %426 : vector<1x8x128xf32>
    %c1_214 = arith.constant 1 : index
    %c1_215 = arith.constant 1 : index
    %428 = memref.load %arg6[%c1_214, %c1_215] : memref<4x8xf32, #tpu.memory_space<smem>>
    %429 = vector.broadcast %428 : f32 to vector<1x8x128xf32>
    %430 = arith.mulf %171, %429 : vector<1x8x128xf32>
    %c1_216 = arith.constant 1 : index
    %c2_217 = arith.constant 2 : index
    %431 = memref.load %arg6[%c1_216, %c2_217] : memref<4x8xf32, #tpu.memory_space<smem>>
    %432 = vector.broadcast %431 : f32 to vector<1x8x128xf32>
    %433 = arith.mulf %207, %432 : vector<1x8x128xf32>
    %434 = arith.addf %427, %433 : vector<1x8x128xf32>
    %c1_218 = arith.constant 1 : index
    %c3_219 = arith.constant 3 : index
    %435 = memref.load %arg6[%c1_218, %c3_219] : memref<4x8xf32, #tpu.memory_space<smem>>
    %436 = vector.broadcast %435 : f32 to vector<1x8x128xf32>
    %437 = arith.mulf %243, %436 : vector<1x8x128xf32>
    %438 = arith.addf %430, %437 : vector<1x8x128xf32>
    %c1_220 = arith.constant 1 : index
    %c4_221 = arith.constant 4 : index
    %439 = memref.load %arg6[%c1_220, %c4_221] : memref<4x8xf32, #tpu.memory_space<smem>>
    %440 = vector.broadcast %439 : f32 to vector<1x8x128xf32>
    %441 = arith.mulf %279, %440 : vector<1x8x128xf32>
    %442 = arith.addf %434, %441 : vector<1x8x128xf32>
    %c1_222 = arith.constant 1 : index
    %c5_223 = arith.constant 5 : index
    %443 = memref.load %arg6[%c1_222, %c5_223] : memref<4x8xf32, #tpu.memory_space<smem>>
    %444 = vector.broadcast %443 : f32 to vector<1x8x128xf32>
    %445 = arith.mulf %315, %444 : vector<1x8x128xf32>
    %446 = arith.addf %438, %445 : vector<1x8x128xf32>
    %c1_224 = arith.constant 1 : index
    %c6_225 = arith.constant 6 : index
    %447 = memref.load %arg6[%c1_224, %c6_225] : memref<4x8xf32, #tpu.memory_space<smem>>
    %448 = vector.broadcast %447 : f32 to vector<1x8x128xf32>
    %449 = arith.mulf %351, %448 : vector<1x8x128xf32>
    %450 = arith.addf %442, %449 : vector<1x8x128xf32>
    %c1_226 = arith.constant 1 : index
    %c7_227 = arith.constant 7 : index
    %451 = memref.load %arg6[%c1_226, %c7_227] : memref<4x8xf32, #tpu.memory_space<smem>>
    %452 = vector.broadcast %451 : f32 to vector<1x8x128xf32>
    %453 = arith.mulf %387, %452 : vector<1x8x128xf32>
    %454 = arith.addf %446, %453 : vector<1x8x128xf32>
    %455 = arith.addf %450, %454 : vector<1x8x128xf32>
    %c1_228 = arith.constant 1 : index
    %456 = memref.load %arg7[%c1_228] : memref<4xf32, #tpu.memory_space<smem>>
    %457 = vector.broadcast %456 : f32 to vector<1x8x128xf32>
    %458 = arith.addf %455, %457 : vector<1x8x128xf32>
    %c1_229 = arith.constant 1 : index
    %c0_230 = arith.constant 0 : index
    %c0_231 = arith.constant 0 : index
    %c0_232 = arith.constant 0 : index
    %459 = vector.load %arg8[%c1_229, %c0_230, %c0_231, %c0_232] : memref<4x1x8x128xf32, #tpu.memory_space<vmem>>, vector<1x1x8x128xf32>
    %460 = vector.shape_cast %459 : vector<1x1x8x128xf32> to vector<1x8x128xf32>
    %461 = vector.shape_cast %458 : vector<1x8x128xf32> to vector<1x1x8x128xf32>
    tpu.vector_store %arg8[%c1_229, %c0_230, %c0_231, %c0_232], %461 {strides = array<i32>} : memref<4x1x8x128xf32, #tpu.memory_space<vmem>>, vector<1x1x8x128xf32>,
    %c2_233 = arith.constant 2 : index
    %c0_234 = arith.constant 0 : index
    %462 = memref.load %arg6[%c2_233, %c0_234] : memref<4x8xf32, #tpu.memory_space<smem>>
    %463 = vector.broadcast %462 : f32 to vector<1x8x128xf32>
    %464 = arith.mulf %135, %463 : vector<1x8x128xf32>
    %c2_235 = arith.constant 2 : index
    %c1_236 = arith.constant 1 : index
    %465 = memref.load %arg6[%c2_235, %c1_236] : memref<4x8xf32, #tpu.memory_space<smem>>
    %466 = vector.broadcast %465 : f32 to vector<1x8x128xf32>
    %467 = arith.mulf %171, %466 : vector<1x8x128xf32>
    %c2_237 = arith.constant 2 : index
    %c2_238 = arith.constant 2 : index
    %468 = memref.load %arg6[%c2_237, %c2_238] : memref<4x8xf32, #tpu.memory_space<smem>>
    %469 = vector.broadcast %468 : f32 to vector<1x8x128xf32>
    %470 = arith.mulf %207, %469 : vector<1x8x128xf32>
    %471 = arith.addf %464, %470 : vector<1x8x128xf32>
    %c2_239 = arith.constant 2 : index
    %c3_240 = arith.constant 3 : index
    %472 = memref.load %arg6[%c2_239, %c3_240] : memref<4x8xf32, #tpu.memory_space<smem>>
    %473 = vector.broadcast %472 : f32 to vector<1x8x128xf32>
    %474 = arith.mulf %243, %473 : vector<1x8x128xf32>
    %475 = arith.addf %467, %474 : vector<1x8x128xf32>
    %c2_241 = arith.constant 2 : index
    %c4_242 = arith.constant 4 : index
    %476 = memref.load %arg6[%c2_241, %c4_242] : memref<4x8xf32, #tpu.memory_space<smem>>
    %477 = vector.broadcast %476 : f32 to vector<1x8x128xf32>
    %478 = arith.mulf %279, %477 : vector<1x8x128xf32>
    %479 = arith.addf %471, %478 : vector<1x8x128xf32>
    %c2_243 = arith.constant 2 : index
    %c5_244 = arith.constant 5 : index
    %480 = memref.load %arg6[%c2_243, %c5_244] : memref<4x8xf32, #tpu.memory_space<smem>>
    %481 = vector.broadcast %480 : f32 to vector<1x8x128xf32>
    %482 = arith.mulf %315, %481 : vector<1x8x128xf32>
    %483 = arith.addf %475, %482 : vector<1x8x128xf32>
    %c2_245 = arith.constant 2 : index
    %c6_246 = arith.constant 6 : index
    %484 = memref.load %arg6[%c2_245, %c6_246] : memref<4x8xf32, #tpu.memory_space<smem>>
    %485 = vector.broadcast %484 : f32 to vector<1x8x128xf32>
    %486 = arith.mulf %351, %485 : vector<1x8x128xf32>
    %487 = arith.addf %479, %486 : vector<1x8x128xf32>
    %c2_247 = arith.constant 2 : index
    %c7_248 = arith.constant 7 : index
    %488 = memref.load %arg6[%c2_247, %c7_248] : memref<4x8xf32, #tpu.memory_space<smem>>
    %489 = vector.broadcast %488 : f32 to vector<1x8x128xf32>
    %490 = arith.mulf %387, %489 : vector<1x8x128xf32>
    %491 = arith.addf %483, %490 : vector<1x8x128xf32>
    %492 = arith.addf %487, %491 : vector<1x8x128xf32>
    %c2_249 = arith.constant 2 : index
    %493 = memref.load %arg7[%c2_249] : memref<4xf32, #tpu.memory_space<smem>>
    %494 = vector.broadcast %493 : f32 to vector<1x8x128xf32>
    %495 = arith.addf %492, %494 : vector<1x8x128xf32>
    %c2_250 = arith.constant 2 : index
    %c0_251 = arith.constant 0 : index
    %c0_252 = arith.constant 0 : index
    %c0_253 = arith.constant 0 : index
    %496 = vector.load %arg8[%c2_250, %c0_251, %c0_252, %c0_253] : memref<4x1x8x128xf32, #tpu.memory_space<vmem>>, vector<1x1x8x128xf32>
    %497 = vector.shape_cast %496 : vector<1x1x8x128xf32> to vector<1x8x128xf32>
    %498 = vector.shape_cast %495 : vector<1x8x128xf32> to vector<1x1x8x128xf32>
    tpu.vector_store %arg8[%c2_250, %c0_251, %c0_252, %c0_253], %498 {strides = array<i32>} : memref<4x1x8x128xf32, #tpu.memory_space<vmem>>, vector<1x1x8x128xf32>,
    %c3_254 = arith.constant 3 : index
    %c0_255 = arith.constant 0 : index
    %499 = memref.load %arg6[%c3_254, %c0_255] : memref<4x8xf32, #tpu.memory_space<smem>>
    %500 = vector.broadcast %499 : f32 to vector<1x8x128xf32>
    %501 = arith.mulf %135, %500 : vector<1x8x128xf32>
    %c3_256 = arith.constant 3 : index
    %c1_257 = arith.constant 1 : index
    %502 = memref.load %arg6[%c3_256, %c1_257] : memref<4x8xf32, #tpu.memory_space<smem>>
    %503 = vector.broadcast %502 : f32 to vector<1x8x128xf32>
    %504 = arith.mulf %171, %503 : vector<1x8x128xf32>
    %c3_258 = arith.constant 3 : index
    %c2_259 = arith.constant 2 : index
    %505 = memref.load %arg6[%c3_258, %c2_259] : memref<4x8xf32, #tpu.memory_space<smem>>
    %506 = vector.broadcast %505 : f32 to vector<1x8x128xf32>
    %507 = arith.mulf %207, %506 : vector<1x8x128xf32>
    %508 = arith.addf %501, %507 : vector<1x8x128xf32>
    %c3_260 = arith.constant 3 : index
    %c3_261 = arith.constant 3 : index
    %509 = memref.load %arg6[%c3_260, %c3_261] : memref<4x8xf32, #tpu.memory_space<smem>>
    %510 = vector.broadcast %509 : f32 to vector<1x8x128xf32>
    %511 = arith.mulf %243, %510 : vector<1x8x128xf32>
    %512 = arith.addf %504, %511 : vector<1x8x128xf32>
    %c3_262 = arith.constant 3 : index
    %c4_263 = arith.constant 4 : index
    %513 = memref.load %arg6[%c3_262, %c4_263] : memref<4x8xf32, #tpu.memory_space<smem>>
    %514 = vector.broadcast %513 : f32 to vector<1x8x128xf32>
    %515 = arith.mulf %279, %514 : vector<1x8x128xf32>
    %516 = arith.addf %508, %515 : vector<1x8x128xf32>
    %c3_264 = arith.constant 3 : index
    %c5_265 = arith.constant 5 : index
    %517 = memref.load %arg6[%c3_264, %c5_265] : memref<4x8xf32, #tpu.memory_space<smem>>
    %518 = vector.broadcast %517 : f32 to vector<1x8x128xf32>
    %519 = arith.mulf %315, %518 : vector<1x8x128xf32>
    %520 = arith.addf %512, %519 : vector<1x8x128xf32>
    %c3_266 = arith.constant 3 : index
    %c6_267 = arith.constant 6 : index
    %521 = memref.load %arg6[%c3_266, %c6_267] : memref<4x8xf32, #tpu.memory_space<smem>>
    %522 = vector.broadcast %521 : f32 to vector<1x8x128xf32>
    %523 = arith.mulf %351, %522 : vector<1x8x128xf32>
    %524 = arith.addf %516, %523 : vector<1x8x128xf32>
    %c3_268 = arith.constant 3 : index
    %c7_269 = arith.constant 7 : index
    %525 = memref.load %arg6[%c3_268, %c7_269] : memref<4x8xf32, #tpu.memory_space<smem>>
    %526 = vector.broadcast %525 : f32 to vector<1x8x128xf32>
    %527 = arith.mulf %387, %526 : vector<1x8x128xf32>
    %528 = arith.addf %520, %527 : vector<1x8x128xf32>
    %529 = arith.addf %524, %528 : vector<1x8x128xf32>
    %c3_270 = arith.constant 3 : index
    %530 = memref.load %arg7[%c3_270] : memref<4xf32, #tpu.memory_space<smem>>
    %531 = vector.broadcast %530 : f32 to vector<1x8x128xf32>
    %532 = arith.addf %529, %531 : vector<1x8x128xf32>
    %c3_271 = arith.constant 3 : index
    %c0_272 = arith.constant 0 : index
    %c0_273 = arith.constant 0 : index
    %c0_274 = arith.constant 0 : index
    %533 = vector.load %arg8[%c3_271, %c0_272, %c0_273, %c0_274] : memref<4x1x8x128xf32, #tpu.memory_space<vmem>>, vector<1x1x8x128xf32>
    %534 = vector.shape_cast %533 : vector<1x1x8x128xf32> to vector<1x8x128xf32>
    %535 = vector.shape_cast %532 : vector<1x8x128xf32> to vector<1x1x8x128xf32>
    tpu.vector_store %arg8[%c3_271, %c0_272, %c0_273, %c0_274], %535 {strides = array<i32>} : memref<4x1x8x128xf32, #tpu.memory_space<vmem>>, vector<1x1x8x128xf32>,
    return
  }
  func.func @transform_0(%arg0: i32) -> (i32, i32, i32, i32) {
    %c0_i32 = arith.constant 0 : i32
    %c0_i32_0 = arith.constant 0 : i32
    %c0_i32_1 = arith.constant 0 : i32
    %c0_i32_2 = arith.constant 0 : i32
    return %c0_i32, %arg0, %c0_i32_0, %c0_i32_1 : i32, i32, i32, i32
  }
  func.func @transform_1(%arg0: i32) -> (i32, i32) {
    %c0_i32 = arith.constant 0 : i32
    %c0_i32_0 = arith.constant 0 : i32
    %c0_i32_1 = arith.constant 0 : i32
    return %c0_i32, %c0_i32_0 : i32, i32
  }
  func.func @transform_2(%arg0: i32) -> i32 {
    %c0_i32 = arith.constant 0 : i32
    %c0_i32_0 = arith.constant 0 : i32
    return %c0_i32 : i32
  }
  func.func @transform_3(%arg0: i32) -> (i32, i32) {
    %c0_i32 = arith.constant 0 : i32
    %c0_i32_0 = arith.constant 0 : i32
    %c0_i32_1 = arith.constant 0 : i32
    return %c0_i32, %c0_i32_0 : i32, i32
  }
  func.func @transform_4(%arg0: i32) -> i32 {
    %c0_i32 = arith.constant 0 : i32
    %c0_i32_0 = arith.constant 0 : i32
    return %c0_i32 : i32
  }
  func.func @transform_5(%arg0: i32) -> (i32, i32) {
    %c0_i32 = arith.constant 0 : i32
    %c0_i32_0 = arith.constant 0 : i32
    %c0_i32_1 = arith.constant 0 : i32
    return %c0_i32, %c0_i32_0 : i32, i32
  }
  func.func @transform_6(%arg0: i32) -> i32 {
    %c0_i32 = arith.constant 0 : i32
    %c0_i32_0 = arith.constant 0 : i32
    return %c0_i32 : i32
  }
  func.func @transform_7(%arg0: i32) -> (i32, i32, i32, i32) {
    %c0_i32 = arith.constant 0 : i32
    %c0_i32_0 = arith.constant 0 : i32
    %c0_i32_1 = arith.constant 0 : i32
    %c0_i32_2 = arith.constant 0 : i32
    return %c0_i32, %arg0, %c0_i32_0, %c0_i32_1 : i32, i32, i32, i32
  }
}

</mosaic_0001>

<llo_original>
// kernel: qnet_ind_forward_feature_major.1
$region0: #{qnet_ind_forward_feature_major.1}
  #allocation0 [shape = 'u32[]', space=smem, size = 0x4, offset = 0x4, fixed_abs, tag = 'smem constant byte address 0x4 - core index']
  #allocation1 [shape = 'u32[144,128]{1,0:T(1,128)}', space=vmem, size = 0x12000, scoped, tag = 'internal scratch']
  %s0 = inlined_call_operand.vmem [shape: f32[2,1,8,128], index: 0, kind: input, shape index: {}]
  %s1 = inlined_call_operand.vmem [shape: f32[8,2], index: 1, kind: input, shape index: {}]
  %s2 = inlined_call_operand.vmem [shape: f32[8], index: 2, kind: input, shape index: {}]
  %s3 = inlined_call_operand.vmem [shape: f32[8,8], index: 3, kind: input, shape index: {}]
  %s4 = inlined_call_operand.vmem [shape: f32[8], index: 4, kind: input, shape index: {}]
  %s5 = inlined_call_operand.vmem [shape: f32[4,8], index: 5, kind: input, shape index: {}]
  %s6 = inlined_call_operand.vmem [shape: f32[4], index: 6, kind: input, shape index: {}]
  %s7 = inlined_call_operand.vmem [shape: f32[4,1,8,128], index: 7, kind: output, shape index: {}]
  %s8 = sld [smem:[#allocation0]]
  $region62: #{qnet_ind_forward_feature_major.1} parent=0
    _
  %s10 = ssub.s32 1, %s8
  %s11 = scalar_select 0, %s10, %s8
  $region1: #{qnet_ind_forward_feature_major.1} parent=0
    #allocation2 [shape = 'u8[4096]{0}', space=smem, size = 0x1000, scoped, tag = 'input window, operand 1, single buffered']
    #allocation3 [shape = 's32[1]{0}', space=sflag, size = 0x4, scoped, tag = 'scoped memory for qnet_ind_forward_feature_major.1']
    #allocation4 [shape = 'u8[512]{0}', space=smem, size = 0x200, scoped, tag = 'input window, operand 2, single buffered']
    #allocation5 [shape = 's32[1]{0}', space=sflag, size = 0x4, scoped, tag = 'scoped memory for qnet_ind_forward_feature_major.1']
    #allocation6 [shape = 'u8[4096]{0}', space=smem, size = 0x1000, scoped, tag = 'input window, operand 3, single buffered']
    #allocation7 [shape = 'u8[512]{0}', space=smem, size = 0x200, scoped, tag = 'input window, operand 4, single buffered']
    #allocation8 [shape = 's32[1]{0}', space=sflag, size = 0x4, scoped, tag = 'scoped memory for qnet_ind_forward_feature_major.1']
    #allocation9 [shape = 'u8[2048]{0}', space=smem, size = 0x800, scoped, tag = 'input window, operand 5, single buffered']
    #allocation10 [shape = 'u8[512]{0}', space=smem, size = 0x200, scoped, tag = 'input window, operand 6, single buffered']
    #allocation11 [shape = 's32[1]{0}', space=sflag, size = 0x4, scoped, tag = 'scoped memory for qnet_ind_forward_feature_major.1']
    %12 = vsyncpa [#allocation3], 0
    %13 = vsyncpa [#allocation5], 0
    %14 = vsyncpa [#allocation8], 0
    %15 = vsyncpa [#allocation11], 0
    // Predicated region
    $region2: #{qnet_ind_forward_feature_major.1} parent=1 // pred_check
      _
    $region3: #{qnet_ind_forward_feature_major.1} parent=1 // pred_check_branch
      %17 = sbr.rel (0) target = $region5
    $region4: #{qnet_ind_forward_feature_major.1} parent=1 // pred_region
      _
    $region5: #{qnet_ind_forward_feature_major.1} parent=1 // pred_fallthru
      _
    // Predicated region
    $region6: #{qnet_ind_forward_feature_major.1} parent=1 // pred_check
      _
    $region7: #{qnet_ind_forward_feature_major.1} parent=1 // pred_check_branch
      %19 = sbr.rel (0) target = $region9
    $region8: #{qnet_ind_forward_feature_major.1} parent=1 // pred_region
      %s21 = ssub.s32 128, 128
      %22 = vsyncadd [#allocation3], %s21
      %s24 = sshll.u32 %s1, 4
      %s25 = int_to_ptr.vmem [resolvable:$true] %s24
      %27 = dma.vmem_to_smem %s25, 128, [#allocation2], [#allocation3]
    $region9: #{qnet_ind_forward_feature_major.1} parent=1 // pred_fallthru
      _
    // Predicated region
    $region10: #{qnet_ind_forward_feature_major.1} parent=1 // pred_check
      _
    $region11: #{qnet_ind_forward_feature_major.1} parent=1 // pred_check_branch
      %29 = sbr.rel (0) target = $region13
    $region12: #{qnet_ind_forward_feature_major.1} parent=1 // pred_region
      %s31 = ssub.s32 16, 16
      %32 = vsyncadd [#allocation5], %s31
      %s34 = sshll.u32 %s2, 4
      %s35 = int_to_ptr.vmem [resolvable:$true] %s34
      %37 = dma.vmem_to_smem %s35, 16, [#allocation4], [#allocation5]
    $region13: #{qnet_ind_forward_feature_major.1} parent=1 // pred_fallthru
      _
    // Predicated region
    $region14: #{qnet_ind_forward_feature_major.1} parent=1 // pred_check
      _
    $region15: #{qnet_ind_forward_feature_major.1} parent=1 // pred_check_branch
      %39 = sbr.rel (0) target = $region17
    $region16: #{qnet_ind_forward_feature_major.1} parent=1 // pred_region
      %s41 = ssub.s32 128, 128
      %42 = vsyncadd [#allocation5], %s41
      %s44 = sshll.u32 %s3, 4
      %s45 = int_to_ptr.vmem [resolvable:$true] %s44
      %47 = dma.vmem_to_smem %s45, 128, [#allocation6], [#allocation5]
    $region17: #{qnet_ind_forward_feature_major.1} parent=1 // pred_fallthru
      _
    // Predicated region
    $region18: #{qnet_ind_forward_feature_major.1} parent=1 // pred_check
      _
    $region19: #{qnet_ind_forward_feature_major.1} parent=1 // pred_check_branch
      %49 = sbr.rel (0) target = $region21
    $region20: #{qnet_ind_forward_feature_major.1} parent=1 // pred_region
      %s51 = ssub.s32 16, 16
      %52 = vsyncadd [#allocation8], %s51
      %s54 = sshll.u32 %s4, 4
      %s55 = int_to_ptr.vmem [resolvable:$true] %s54
      %57 = dma.vmem_to_smem %s55, 16, [#allocation7], [#allocation8]
    $region21: #{qnet_ind_forward_feature_major.1} parent=1 // pred_fallthru
      _
    // Predicated region
    $region22: #{qnet_ind_forward_feature_major.1} parent=1 // pred_check
      _
    $region23: #{qnet_ind_forward_feature_major.1} parent=1 // pred_check_branch
      %59 = sbr.rel (0) target = $region25
    $region24: #{qnet_ind_forward_feature_major.1} parent=1 // pred_region
      %s61 = ssub.s32 64, 64
      %62 = vsyncadd [#allocation8], %s61
      %s64 = sshll.u32 %s5, 4
      %s65 = int_to_ptr.vmem [resolvable:$true] %s64
      %67 = dma.vmem_to_smem %s65, 64, [#allocation9], [#allocation8]
    $region25: #{qnet_ind_forward_feature_major.1} parent=1 // pred_fallthru
      _
    // Predicated region
    $region26: #{qnet_ind_forward_feature_major.1} parent=1 // pred_check
      _
    $region27: #{qnet_ind_forward_feature_major.1} parent=1 // pred_check_branch
      %69 = sbr.rel (0) target = $region29
    $region28: #{qnet_ind_forward_feature_major.1} parent=1 // pred_region
      %s71 = ssub.s32 16, 16
      %72 = vsyncadd [#allocation11], %s71
      %s74 = sshll.u32 %s6, 4
      %s75 = int_to_ptr.vmem [resolvable:$true] %s74
      %77 = dma.vmem_to_smem %s75, 16, [#allocation10], [#allocation11]
    $region29: #{qnet_ind_forward_feature_major.1} parent=1 // pred_fallthru
      _
    // Predicated region
    $region30: #{qnet_ind_forward_feature_major.1} parent=1 // pred_check
      _
    $region31: #{qnet_ind_forward_feature_major.1} parent=1 // pred_check_branch
      %79 = sbr.rel (0) target = $region33
    $region32: #{qnet_ind_forward_feature_major.1} parent=1 // pred_region
      %80 = dma.done [#allocation3], 128
    $region33: #{qnet_ind_forward_feature_major.1} parent=1 // pred_fallthru
      _
    // Predicated region
    $region34: #{qnet_ind_forward_feature_major.1} parent=1 // pred_check
      _
    $region35: #{qnet_ind_forward_feature_major.1} parent=1 // pred_check_branch
      %82 = sbr.rel (0) target = $region37
    $region36: #{qnet_ind_forward_feature_major.1} parent=1 // pred_region
      %83 = dma.done [#allocation5], 16
    $region37: #{qnet_ind_forward_feature_major.1} parent=1 // pred_fallthru
      _
    // Predicated region
    $region38: #{qnet_ind_forward_feature_major.1} parent=1 // pred_check
      _
    $region39: #{qnet_ind_forward_feature_major.1} parent=1 // pred_check_branch
      %85 = sbr.rel (0) target = $region41
    $region40: #{qnet_ind_forward_feature_major.1} parent=1 // pred_region
      %86 = dma.done [#allocation5], 128
    $region41: #{qnet_ind_forward_feature_major.1} parent=1 // pred_fallthru
      _
    // Predicated region
    $region42: #{qnet_ind_forward_feature_major.1} parent=1 // pred_check
      _
    $region43: #{qnet_ind_forward_feature_major.1} parent=1 // pred_check_branch
      %88 = sbr.rel (0) target = $region45
    $region44: #{qnet_ind_forward_feature_major.1} parent=1 // pred_region
      %89 = dma.done [#allocation8], 16
    $region45: #{qnet_ind_forward_feature_major.1} parent=1 // pred_fallthru
      _
    // Predicated region
    $region46: #{qnet_ind_forward_feature_major.1} parent=1 // pred_check
      _
    $region47: #{qnet_ind_forward_feature_major.1} parent=1 // pred_check_branch
      %91 = sbr.rel (0) target = $region49
    $region48: #{qnet_ind_forward_feature_major.1} parent=1 // pred_region
      %92 = dma.done [#allocation8], 64
    $region49: #{qnet_ind_forward_feature_major.1} parent=1 // pred_fallthru
      _
    // Predicated region
    $region50: #{qnet_ind_forward_feature_major.1} parent=1 // pred_check
      _
    $region51: #{qnet_ind_forward_feature_major.1} parent=1 // pred_check_branch
      %94 = sbr.rel (0) target = $region53
    $region52: #{qnet_ind_forward_feature_major.1} parent=1 // pred_region
      %95 = dma.done [#allocation11], 16
    $region53: #{qnet_ind_forward_feature_major.1} parent=1 // pred_fallthru
      _
    %96 = sfence
    %v97 = vld [vmem:[%s0] sm:$0xff]
    %s98 = scalar_lea.vmem %s0, 8
    %v99 = vld [vmem:[%s98] sm:$0xff]
    %s100 = sld [smem:[#allocation2]]
    %v101 = vstv %s100
    %v102 = vmul.f32 %v97, %v101
    %s103 = sld [smem:[#allocation2 + $0x1]]
    %v104 = vstv %s103
    %v105 = vmul.f32 %v99, %v104
    %v106 = vadd.f32 %v102, %v105
    %s107 = sld [smem:[#allocation4]]
    %v108 = vstv %s107
    %v109 = vadd.f32 %v106, %v108
    %v110 = vmax.f32 %v109, 0.0
    %s111 = sld [smem:[#allocation2 + $0x80]]
    %v112 = vstv %s111
    %v113 = vmul.f32 %v97, %v112
    %s114 = sld [smem:[#allocation2 + $0x81]]
    %v115 = vstv %s114
    %v116 = vmul.f32 %v99, %v115
    %v117 = vadd.f32 %v113, %v116
    %s118 = sld [smem:[#allocation4 + $0x1]]
    %v119 = vstv %s118
    %v120 = vadd.f32 %v117, %v119
    %v121 = vmax.f32 %v120, 0.0
    %s122 = sld [smem:[#allocation2 + $0x100]]
    %v123 = vstv %s122
    %v124 = vmul.f32 %v97, %v123
    %s125 = sld [smem:[#allocation2 + $0x101]]
    %v126 = vstv %s125
    %v127 = vmul.f32 %v99, %v126
    %v128 = vadd.f32 %v124, %v127
    %s129 = sld [smem:[#allocation4 + $0x2]]
    %v130 = vstv %s129
    %v131 = vadd.f32 %v128, %v130
    %v132 = vmax.f32 %v131, 0.0
    %s133 = sld [smem:[#allocation2 + $0x180]]
    %v134 = vstv %s133
    %v135 = vmul.f32 %v97, %v134
    %s136 = sld [smem:[#allocation2 + $0x181]]
    %v137 = vstv %s136
    %v138 = vmul.f32 %v99, %v137
    %v139 = vadd.f32 %v135, %v138
    %s140 = sld [smem:[#allocation4 + $0x3]]
    %v141 = vstv %s140
    %v142 = vadd.f32 %v139, %v141
    %v143 = vmax.f32 %v142, 0.0
    %s144 = sld [smem:[#allocation2 + $0x200]]
    %v145 = vstv %s144
    %v146 = vmul.f32 %v97, %v145
    %s147 = sld [smem:[#allocation2 + $0x201]]
    %v148 = vstv %s147
    %v149 = vmul.f32 %v99, %v148
    %v150 = vadd.f32 %v146, %v149
    %s151 = sld [smem:[#allocation4 + $0x4]]
    %v152 = vstv %s151
    %v153 = vadd.f32 %v150, %v152
    %v154 = vmax.f32 %v153, 0.0
    %s155 = sld [smem:[#allocation2 + $0x280]]
    %v156 = vstv %s155
    %v157 = vmul.f32 %v97, %v156
    %s158 = sld [smem:[#allocation2 + $0x281]]
    %v159 = vstv %s158
    %v160 = vmul.f32 %v99, %v159
    %v161 = vadd.f32 %v157, %v160
    %s162 = sld [smem:[#allocation4 + $0x5]]
    %v163 = vstv %s162
    %v164 = vadd.f32 %v161, %v163
    %v165 = vmax.f32 %v164, 0.0
    %s166 = sld [smem:[#allocation2 + $0x300]]
    %v167 = vstv %s166
    %v168 = vmul.f32 %v97, %v167
    %s169 = sld [smem:[#allocation2 + $0x301]]
    %v170 = vstv %s169
    %v171 = vmul.f32 %v99, %v170
    %v172 = vadd.f32 %v168, %v171
    %s173 = sld [smem:[#allocation4 + $0x6]]
    %v174 = vstv %s173
    %v175 = vadd.f32 %v172, %v174
    %v176 = vmax.f32 %v175, 0.0
    %s177 = sld [smem:[#allocation2 + $0x380]]
    %v178 = vstv %s177
    %v179 = vmul.f32 %v97, %v178
    %s180 = sld [smem:[#allocation2 + $0x381]]
    %v181 = vstv %s180
    %v182 = vmul.f32 %v99, %v181
    %v183 = vadd.f32 %v179, %v182
    %s184 = sld [smem:[#allocation4 + $0x7]]
    %v185 = vstv %s184
    %v186 = vadd.f32 %v183, %v185
    %v187 = vmax.f32 %v186, 0.0
    %s188 = sld [smem:[#allocation6]]
    %v189 = vstv %s188
    %v190 = vmul.f32 %v110, %v189
    %s191 = sld [smem:[#allocation6 + $0x1]]
    %v192 = vstv %s191
    %v193 = vmul.f32 %v121, %v192
    %s194 = sld [smem:[#allocation6 + $0x2]]
    %v195 = vstv %s194
    %v196 = vmul.f32 %v132, %v195
    %v197 = vadd.f32 %v190, %v196
    %s198 = sld [smem:[#allocation6 + $0x3]]
    %v199 = vstv %s198
    %v200 = vmul.f32 %v143, %v199
    %v201 = vadd.f32 %v193, %v200
    %s202 = sld [smem:[#allocation6 + $0x4]]
    %v203 = vstv %s202
    %v204 = vmul.f32 %v154, %v203
    %v205 = vadd.f32 %v197, %v204
    %s206 = sld [smem:[#allocation6 + $0x5]]
    %v207 = vstv %s206
    %v208 = vmul.f32 %v165, %v207
    %v209 = vadd.f32 %v201, %v208
    %s210 = sld [smem:[#allocation6 + $0x6]]
    %v211 = vstv %s210
    %v212 = vmul.f32 %v176, %v211
    %v213 = vadd.f32 %v205, %v212
    %s214 = sld [smem:[#allocation6 + $0x7]]
    %v215 = vstv %s214
    %v216 = vmul.f32 %v187, %v215
    %v217 = vadd.f32 %v209, %v216
    %v218 = vadd.f32 %v213, %v217
    %s219 = sld [smem:[#allocation7]]
    %v220 = vstv %s219
    %v221 = vadd.f32 %v218, %v220
    %v222 = vmax.f32 %v221, 0.0
    %s223 = sld [smem:[#allocation6 + $0x80]]
    %v224 = vstv %s223
    %v225 = vmul.f32 %v110, %v224
    %s226 = sld [smem:[#allocation6 + $0x81]]
    %v227 = vstv %s226
    %v228 = vmul.f32 %v121, %v227
    %s229 = sld [smem:[#allocation6 + $0x82]]
    %v230 = vstv %s229
    %v231 = vmul.f32 %v132, %v230
    %v232 = vadd.f32 %v225, %v231
    %s233 = sld [smem:[#allocation6 + $0x83]]
    %v234 = vstv %s233
    %v235 = vmul.f32 %v143, %v234
    %v236 = vadd.f32 %v228, %v235
    %s237 = sld [smem:[#allocation6 + $0x84]]
    %v238 = vstv %s237
    %v239 = vmul.f32 %v154, %v238
    %v240 = vadd.f32 %v232, %v239
    %s241 = sld [smem:[#allocation6 + $0x85]]
    %v242 = vstv %s241
    %v243 = vmul.f32 %v165, %v242
    %v244 = vadd.f32 %v236, %v243
    %s245 = sld [smem:[#allocation6 + $0x86]]
    %v246 = vstv %s245
    %v247 = vmul.f32 %v176, %v246
    %v248 = vadd.f32 %v240, %v247
    %s249 = sld [smem:[#allocation6 + $0x87]]
    %v250 = vstv %s249
    %v251 = vmul.f32 %v187, %v250
    %v252 = vadd.f32 %v244, %v251
    %v253 = vadd.f32 %v248, %v252
    %s254 = sld [smem:[#allocation7 + $0x1]]
    %v255 = vstv %s254
    %v256 = vadd.f32 %v253, %v255
    %v257 = vmax.f32 %v256, 0.0
    %s258 = sld [smem:[#allocation6 + $0x100]]
    %v259 = vstv %s258
    %v260 = vmul.f32 %v110, %v259
    %s261 = sld [smem:[#allocation6 + $0x101]]
    %v262 = vstv %s261
    %v263 = vmul.f32 %v121, %v262
    %s264 = sld [smem:[#allocation6 + $0x102]]
    %v265 = vstv %s264
    %v266 = vmul.f32 %v132, %v265
    %v267 = vadd.f32 %v260, %v266
    %s268 = sld [smem:[#allocation6 + $0x103]]
    %v269 = vstv %s268
    %v270 = vmul.f32 %v143, %v269
    %v271 = vadd.f32 %v263, %v270
    %s272 = sld [smem:[#allocation6 + $0x104]]
    %v273 = vstv %s272
    %v274 = vmul.f32 %v154, %v273
    %v275 = vadd.f32 %v267, %v274
    %s276 = sld [smem:[#allocation6 + $0x105]]
    %v277 = vstv %s276
    %v278 = vmul.f32 %v165, %v277
    %v279 = vadd.f32 %v271, %v278
    %s280 = sld [smem:[#allocation6 + $0x106]]
    %v281 = vstv %s280
    %v282 = vmul.f32 %v176, %v281
    %v283 = vadd.f32 %v275, %v282
    %s284 = sld [smem:[#allocation6 + $0x107]]
    %v285 = vstv %s284
    %v286 = vmul.f32 %v187, %v285
    %v287 = vadd.f32 %v279, %v286
    %v288 = vadd.f32 %v283, %v287
    %s289 = sld [smem:[#allocation7 + $0x2]]
    %v290 = vstv %s289
    %v291 = vadd.f32 %v288, %v290
    %v292 = vmax.f32 %v291, 0.0
    %s293 = sld [smem:[#allocation6 + $0x180]]
    %v294 = vstv %s293
    %v295 = vmul.f32 %v110, %v294
    %s296 = sld [smem:[#allocation6 + $0x181]]
    %v297 = vstv %s296
    %v298 = vmul.f32 %v121, %v297
    %s299 = sld [smem:[#allocation6 + $0x182]]
    %v300 = vstv %s299
    %v301 = vmul.f32 %v132, %v300
    %v302 = vadd.f32 %v295, %v301
    %s303 = sld [smem:[#allocation6 + $0x183]]
    %v304 = vstv %s303
    %v305 = vmul.f32 %v143, %v304
    %v306 = vadd.f32 %v298, %v305
    %s307 = sld [smem:[#allocation6 + $0x184]]
    %v308 = vstv %s307
    %v309 = vmul.f32 %v154, %v308
    %v310 = vadd.f32 %v302, %v309
    %s311 = sld [smem:[#allocation6 + $0x185]]
    %v312 = vstv %s311
    %v313 = vmul.f32 %v165, %v312
    %v314 = vadd.f32 %v306, %v313
    %s315 = sld [smem:[#allocation6 + $0x186]]
    %v316 = vstv %s315
    %v317 = vmul.f32 %v176, %v316
    %v318 = vadd.f32 %v310, %v317
    %s319 = sld [smem:[#allocation6 + $0x187]]
    %v320 = vstv %s319
    %v321 = vmul.f32 %v187, %v320
    %v322 = vadd.f32 %v314, %v321
    %v323 = vadd.f32 %v318, %v322
    %s324 = sld [smem:[#allocation7 + $0x3]]
    %v325 = vstv %s324
    %v326 = vadd.f32 %v323, %v325
    %v327 = vmax.f32 %v326, 0.0
    %s328 = sld [smem:[#allocation6 + $0x200]]
    %v329 = vstv %s328
    %v330 = vmul.f32 %v110, %v329
    %s331 = sld [smem:[#allocation6 + $0x201]]
    %v332 = vstv %s331
    %v333 = vmul.f32 %v121, %v332
    %s334 = sld [smem:[#allocation6 + $0x202]]
    %v335 = vstv %s334
    %v336 = vmul.f32 %v132, %v335
    %v337 = vadd.f32 %v330, %v336
    %s338 = sld [smem:[#allocation6 + $0x203]]
    %v339 = vstv %s338
    %v340 = vmul.f32 %v143, %v339
    %v341 = vadd.f32 %v333, %v340
    %s342 = sld [smem:[#allocation6 + $0x204]]
    %v343 = vstv %s342
    %v344 = vmul.f32 %v154, %v343
    %v345 = vadd.f32 %v337, %v344
    %s346 = sld [smem:[#allocation6 + $0x205]]
    %v347 = vstv %s346
    %v348 = vmul.f32 %v165, %v347
    %v349 = vadd.f32 %v341, %v348
    %s350 = sld [smem:[#allocation6 + $0x206]]
    %v351 = vstv %s350
    %v352 = vmul.f32 %v176, %v351
    %v353 = vadd.f32 %v345, %v352
    %s354 = sld [smem:[#allocation6 + $0x207]]
    %v355 = vstv %s354
    %v356 = vmul.f32 %v187, %v355
    %v357 = vadd.f32 %v349, %v356
    %v358 = vadd.f32 %v353, %v357
    %s359 = sld [smem:[#allocation7 + $0x4]]
    %v360 = vstv %s359
    %v361 = vadd.f32 %v358, %v360
    %v362 = vmax.f32 %v361, 0.0
    %s363 = sld [smem:[#allocation6 + $0x280]]
    %v364 = vstv %s363
    %v365 = vmul.f32 %v110, %v364
    %s366 = sld [smem:[#allocation6 + $0x281]]
    %v367 = vstv %s366
    %v368 = vmul.f32 %v121, %v367
    %s369 = sld [smem:[#allocation6 + $0x282]]
    %v370 = vstv %s369
    %v371 = vmul.f32 %v132, %v370
    %v372 = vadd.f32 %v365, %v371
    %s373 = sld [smem:[#allocation6 + $0x283]]
    %v374 = vstv %s373
    %v375 = vmul.f32 %v143, %v374
    %v376 = vadd.f32 %v368, %v375
    %s377 = sld [smem:[#allocation6 + $0x284]]
    %v378 = vstv %s377
    %v379 = vmul.f32 %v154, %v378
    %v380 = vadd.f32 %v372, %v379
    %s381 = sld [smem:[#allocation6 + $0x285]]
    %v382 = vstv %s381
    %v383 = vmul.f32 %v165, %v382
    %v384 = vadd.f32 %v376, %v383
    %s385 = sld [smem:[#allocation6 + $0x286]]
    %v386 = vstv %s385
    %v387 = vmul.f32 %v176, %v386
    %v388 = vadd.f32 %v380, %v387
    %s389 = sld [smem:[#allocation6 + $0x287]]
    %v390 = vstv %s389
    %v391 = vmul.f32 %v187, %v390
    %v392 = vadd.f32 %v384, %v391
    %v393 = vadd.f32 %v388, %v392
    %s394 = sld [smem:[#allocation7 + $0x5]]
    %v395 = vstv %s394
    %v396 = vadd.f32 %v393, %v395
    %v397 = vmax.f32 %v396, 0.0
    %s398 = sld [smem:[#allocation6 + $0x300]]
    %v399 = vstv %s398
    %v400 = vmul.f32 %v110, %v399
    %s401 = sld [smem:[#allocation6 + $0x301]]
    %v402 = vstv %s401
    %v403 = vmul.f32 %v121, %v402
    %s404 = sld [smem:[#allocation6 + $0x302]]
    %v405 = vstv %s404
    %v406 = vmul.f32 %v132, %v405
    %v407 = vadd.f32 %v400, %v406
    %s408 = sld [smem:[#allocation6 + $0x303]]
    %v409 = vstv %s408
    %v410 = vmul.f32 %v143, %v409
    %v411 = vadd.f32 %v403, %v410
    %s412 = sld [smem:[#allocation6 + $0x304]]
    %v413 = vstv %s412
    %v414 = vmul.f32 %v154, %v413
    %v415 = vadd.f32 %v407, %v414
    %s416 = sld [smem:[#allocation6 + $0x305]]
    %v417 = vstv %s416
    %v418 = vmul.f32 %v165, %v417
    %v419 = vadd.f32 %v411, %v418
    %s420 = sld [smem:[#allocation6 + $0x306]]
    %v421 = vstv %s420
    %v422 = vmul.f32 %v176, %v421
    %v423 = vadd.f32 %v415, %v422
    %s424 = sld [smem:[#allocation6 + $0x307]]
    %v425 = vstv %s424
    %v426 = vmul.f32 %v187, %v425
    %v427 = vadd.f32 %v419, %v426
    %v428 = vadd.f32 %v423, %v427
    %s429 = sld [smem:[#allocation7 + $0x6]]
    %v430 = vstv %s429
    %v431 = vadd.f32 %v428, %v430
    %v432 = vmax.f32 %v431, 0.0
    %s433 = sld [smem:[#allocation6 + $0x380]]
    %v434 = vstv %s433
    %v435 = vmul.f32 %v110, %v434
    %s436 = sld [smem:[#allocation6 + $0x381]]
    %v437 = vstv %s436
    %v438 = vmul.f32 %v121, %v437
    %s439 = sld [smem:[#allocation6 + $0x382]]
    %v440 = vstv %s439
    %v441 = vmul.f32 %v132, %v440
    %v442 = vadd.f32 %v435, %v441
    %s443 = sld [smem:[#allocation6 + $0x383]]
    %v444 = vstv %s443
    %v445 = vmul.f32 %v143, %v444
    %v446 = vadd.f32 %v438, %v445
    %s447 = sld [smem:[#allocation6 + $0x384]]
    %v448 = vstv %s447
    %v449 = vmul.f32 %v154, %v448
    %v450 = vadd.f32 %v442, %v449
    %s451 = sld [smem:[#allocation6 + $0x385]]
    %v452 = vstv %s451
    %v453 = vmul.f32 %v165, %v452
    %v454 = vadd.f32 %v446, %v453
    %s455 = sld [smem:[#allocation6 + $0x386]]
    %v456 = vstv %s455
    %v457 = vmul.f32 %v176, %v456
    %v458 = vadd.f32 %v450, %v457
    %s459 = sld [smem:[#allocation6 + $0x387]]
    %v460 = vstv %s459
    %v461 = vmul.f32 %v187, %v460
    %v462 = vadd.f32 %v454, %v461
    %v463 = vadd.f32 %v458, %v462
    %s464 = sld [smem:[#allocation7 + $0x7]]
    %v465 = vstv %s464
    %v466 = vadd.f32 %v463, %v465
    %v467 = vmax.f32 %v466, 0.0
    %s468 = sld [smem:[#allocation9]]
    %v469 = vstv %s468
    %v470 = vmul.f32 %v222, %v469
    %s471 = sld [smem:[#allocation9 + $0x1]]
    %v472 = vstv %s471
    %v473 = vmul.f32 %v257, %v472
    %s474 = sld [smem:[#allocation9 + $0x2]]
    %v475 = vstv %s474
    %v476 = vmul.f32 %v292, %v475
    %v477 = vadd.f32 %v470, %v476
    %s478 = sld [smem:[#allocation9 + $0x3]]
    %v479 = vstv %s478
    %v480 = vmul.f32 %v327, %v479
    %v481 = vadd.f32 %v473, %v480
    %s482 = sld [smem:[#allocation9 + $0x4]]
    %v483 = vstv %s482
    %v484 = vmul.f32 %v362, %v483
    %v485 = vadd.f32 %v477, %v484
    %s486 = sld [smem:[#allocation9 + $0x5]]
    %v487 = vstv %s486
    %v488 = vmul.f32 %v397, %v487
    %v489 = vadd.f32 %v481, %v488
    %s490 = sld [smem:[#allocation9 + $0x6]]
    %v491 = vstv %s490
    %v492 = vmul.f32 %v432, %v491
    %v493 = vadd.f32 %v485, %v492
    %s494 = sld [smem:[#allocation9 + $0x7]]
    %v495 = vstv %s494
    %v496 = vmul.f32 %v467, %v495
    %v497 = vadd.f32 %v489, %v496
    %v498 = vadd.f32 %v493, %v497
    %s499 = sld [smem:[#allocation10]]
    %v500 = vstv %s499
    %v501 = vadd.f32 %v498, %v500
    %502 = vst [vmem:[%s7] sm:$0xff] %v501
    %s503 = sld [smem:[#allocation9 + $0x80]]
    %v504 = vstv %s503
    %v505 = vmul.f32 %v222, %v504
    %s506 = sld [smem:[#allocation9 + $0x81]]
    %v507 = vstv %s506
    %v508 = vmul.f32 %v257, %v507
    %s509 = sld [smem:[#allocation9 + $0x82]]
    %v510 = vstv %s509
    %v511 = vmul.f32 %v292, %v510
    %v512 = vadd.f32 %v505, %v511
    %s513 = sld [smem:[#allocation9 + $0x83]]
    %v514 = vstv %s513
    %v515 = vmul.f32 %v327, %v514
    %v516 = vadd.f32 %v508, %v515
    %s517 = sld [smem:[#allocation9 + $0x84]]
    %v518 = vstv %s517
    %v519 = vmul.f32 %v362, %v518
    %v520 = vadd.f32 %v512, %v519
    %s521 = sld [smem:[#allocation9 + $0x85]]
    %v522 = vstv %s521
    %v523 = vmul.f32 %v397, %v522
    %v524 = vadd.f32 %v516, %v523
    %s525 = sld [smem:[#allocation9 + $0x86]]
    %v526 = vstv %s525
    %v527 = vmul.f32 %v432, %v526
    %v528 = vadd.f32 %v520, %v527
    %s529 = sld [smem:[#allocation9 + $0x87]]
    %v530 = vstv %s529
    %v531 = vmul.f32 %v467, %v530
    %v532 = vadd.f32 %v524, %v531
    %v533 = vadd.f32 %v528, %v532
    %s534 = sld [smem:[#allocation10 + $0x1]]
    %v535 = vstv %s534
    %v536 = vadd.f32 %v533, %v535
    %s537 = scalar_lea.vmem %s7, 8
    %538 = vst [vmem:[%s537] sm:$0xff] %v536
    %s539 = sld [smem:[#allocation9 + $0x100]]
    %v540 = vstv %s539
    %v541 = vmul.f32 %v222, %v540
    %s542 = sld [smem:[#allocation9 + $0x101]]
    %v543 = vstv %s542
    %v544 = vmul.f32 %v257, %v543
    %s545 = sld [smem:[#allocation9 + $0x102]]
    %v546 = vstv %s545
    %v547 = vmul.f32 %v292, %v546
    %v548 = vadd.f32 %v541, %v547
    %s549 = sld [smem:[#allocation9 + $0x103]]
    %v550 = vstv %s549
    %v551 = vmul.f32 %v327, %v550
    %v552 = vadd.f32 %v544, %v551
    %s553 = sld [smem:[#allocation9 + $0x104]]
    %v554 = vstv %s553
    %v555 = vmul.f32 %v362, %v554
    %v556 = vadd.f32 %v548, %v555
    %s557 = sld [smem:[#allocation9 + $0x105]]
    %v558 = vstv %s557
    %v559 = vmul.f32 %v397, %v558
    %v560 = vadd.f32 %v552, %v559
    %s561 = sld [smem:[#allocation9 + $0x106]]
    %v562 = vstv %s561
    %v563 = vmul.f32 %v432, %v562
    %v564 = vadd.f32 %v556, %v563
    %s565 = sld [smem:[#allocation9 + $0x107]]
    %v566 = vstv %s565
    %v567 = vmul.f32 %v467, %v566
    %v568 = vadd.f32 %v560, %v567
    %v569 = vadd.f32 %v564, %v568
    %s570 = sld [smem:[#allocation10 + $0x2]]
    %v571 = vstv %s570
    %v572 = vadd.f32 %v569, %v571
    %s573 = scalar_lea.vmem %s7, 16
    %574 = vst [vmem:[%s573] sm:$0xff] %v572
    %s575 = sld [smem:[#allocation9 + $0x180]]
    %v576 = vstv %s575
    %v577 = vmul.f32 %v222, %v576
    %s578 = sld [smem:[#allocation9 + $0x181]]
    %v579 = vstv %s578
    %v580 = vmul.f32 %v257, %v579
    %s581 = sld [smem:[#allocation9 + $0x182]]
    %v582 = vstv %s581
    %v583 = vmul.f32 %v292, %v582
    %v584 = vadd.f32 %v577, %v583
    %s585 = sld [smem:[#allocation9 + $0x183]]
    %v586 = vstv %s585
    %v587 = vmul.f32 %v327, %v586
    %v588 = vadd.f32 %v580, %v587
    %s589 = sld [smem:[#allocation9 + $0x184]]
    %v590 = vstv %s589
    %v591 = vmul.f32 %v362, %v590
    %v592 = vadd.f32 %v584, %v591
    %s593 = sld [smem:[#allocation9 + $0x185]]
    %v594 = vstv %s593
    %v595 = vmul.f32 %v397, %v594
    %v596 = vadd.f32 %v588, %v595
    %s597 = sld [smem:[#allocation9 + $0x186]]
    %v598 = vstv %s597
    %v599 = vmul.f32 %v432, %v598
    %v600 = vadd.f32 %v592, %v599
    %s601 = sld [smem:[#allocation9 + $0x187]]
    %v602 = vstv %s601
    %v603 = vmul.f32 %v467, %v602
    %v604 = vadd.f32 %v596, %v603
    %v605 = vadd.f32 %v600, %v604
    %s606 = sld [smem:[#allocation10 + $0x3]]
    %v607 = vstv %s606
    %v608 = vadd.f32 %v605, %v607
    %s609 = scalar_lea.vmem %s7, 24
    %610 = vst [vmem:[%s609] sm:$0xff] %v608
    // Predicated region
    $region54: #{qnet_ind_forward_feature_major.1} parent=1 // pred_check
      _
    $region55: #{qnet_ind_forward_feature_major.1} parent=1 // pred_check_branch
      %612 = sbr.rel (0) target = $region57
    $region56: #{qnet_ind_forward_feature_major.1} parent=1 // pred_region
      _
    $region57: #{qnet_ind_forward_feature_major.1} parent=1 // pred_fallthru
      _
    // Predicated region
    $region58: #{qnet_ind_forward_feature_major.1} parent=1 // pred_check
      _
    $region59: #{qnet_ind_forward_feature_major.1} parent=1 // pred_check_branch
      %614 = sbr.rel (0) target = $region61
    $region60: #{qnet_ind_forward_feature_major.1} parent=1 // pred_region
      _
    $region61: #{qnet_ind_forward_feature_major.1} parent=1 // pred_fallthru
      _
    %615 = vsyncpa [#allocation3], 1
    %616 = vsyncpa [#allocation5], 1
    %617 = vsyncpa [#allocation8], 1
    %618 = vsyncpa [#allocation11], 1

</llo_original>
